<compile_context>
chip_gen: v6e
topology: v6e:2x2x1
jax: 0.10.0
libtpu: 0.0.40
codegen_flags: <defaults>
</compile_context>

<pallas_src>
import math

import jax
import jax.numpy as jnp
from jax.experimental import pallas as pl
from jax.experimental.pallas import tpu as pltpu

# Problem sizes (small, synthetic)
B = 8        # batch
D = 32       # x_dim (flattened features)
C = 4        # y_dim (number of classes)
H = 32       # hidden width
Z = 16       # latent dim
CB = C * B   # replicated model batch (mc = iw = 1)
BETA = 1.0   # next(itertools.repeat(1))
# prior = -log_standard_categorical(one_hot); softmax(ones) == 1/C exactly.
PRIOR = math.log(1.0 / C + 1e-8)

# Row offsets inside the packed "big" weight matrix (every block has 32 columns).
_W1X = 0            # (D, H)   encoder  x  -> h1
_WMULV = D          # (H, 2Z)  encoder  h1 -> [mu | logvar]
_WOUT = D + H       # (H, D)   decoder  h2 -> recon logits
_W2Z = D + 2 * H    # (Z, H)   decoder  z  -> h2
_WBIG_ROWS = D + 2 * H + Z


def svi_kernel(x_ref, eps_ref, wbig_ref, wy_ref, wc_ref, bias_ref,
               recon_ref, loss_ref):
    f32 = jnp.float32
    x = x_ref[...]                                   # (B, D)
    one_minus_x = 1.0 - x

    # ---- packed weights / biases (static, sublane-aligned slices) ----
    w1x = wbig_ref[_W1X:_W1X + D, :]                 # (D, H)
    wmulv = wbig_ref[_WMULV:_WMULV + H, :]           # (H, 2Z)
    wout = wbig_ref[_WOUT:_WOUT + H, :]              # (H, D)
    w2z = wbig_ref[_W2Z:_W2Z + Z, :]                 # (Z, H)
    b1 = bias_ref[0:1, :]                            # (1, H)
    bml = bias_ref[1:2, :]                           # (1, 2Z)
    b2 = bias_ref[2:3, :]                            # (1, H)
    bout = bias_ref[3:4, :]                          # (1, D)
    bc = bias_ref[4:5, 0:C]                          # (1, C)

    # ---- classifier on the un-replicated batch (single log_softmax) ----
    cls = jnp.dot(x, wc_ref[...], preferred_element_type=f32) + bc      # (B, C)
    m = jnp.max(cls, axis=-1, keepdims=True)
    sh = cls - m
    logp = sh - jnp.log(jnp.sum(jnp.exp(sh), axis=-1, keepdims=True))   # (B, C)
    logits = jnp.exp(logp)
    h_ent = -jnp.sum(logits * logp, axis=-1, keepdims=True)             # (B, 1)

    # ---- shared encoder term: x @ w1x is identical for every enumerated class ----
    h1x = jnp.dot(x, w1x, preferred_element_type=f32) + b1              # (B, H)

    bce_acc = jnp.zeros((B, 1), dtype=f32)   # sum_d BCE per row, summed over classes
    kl_w = jnp.zeros((B, 1), dtype=f32)      # sum_c logits[:, c] * KL_c

    # Enumerate the C discrete labels in-kernel; one-hot matmuls are row broadcasts.
    for c in range(C):
        w1y_c = wy_ref[c:c + 1, :]                   # (1, H) encoder class embedding
        w2y_c = wy_ref[C + c:C + c + 1, :]           # (1, H) decoder class embedding

        # encoder q(z | x, y=c)
        h1 = jnp.maximum(h1x + w1y_c, 0.0)                               # (B, H)
        mulv = jnp.dot(h1, wmulv, preferred_element_type=f32) + bml      # (B, 2Z)
        mu = mulv[:, 0:Z]
        logvar = mulv[:, Z:2 * Z]
        eps_c = eps_ref[c * B:(c + 1) * B, :]                            # (B, Z)
        z = mu + eps_c * jnp.exp(0.5 * logvar)
        # per-sample KL(q(z|x,y) || N(0, I))  (== model.kl_divergence)
        kl_c = -0.5 * jnp.sum(1.0 + logvar - mu * mu - jnp.exp(logvar),
                              axis=-1, keepdims=True)                    # (B, 1)

        # decoder p(x | y=c, z)
        h2 = jnp.maximum(jnp.dot(z, w2z, preferred_element_type=f32)
                         + w2y_c + b2, 0.0)                              # (B, H)
        o = jnp.dot(h2, wout, preferred_element_type=f32) + bout         # (B, D)

        # sigmoid + BCE in logit space, one shared softplus:
        #   log sigma(o) = -softplus(-o); log(1 - sigma(o)) = -(o + softplus(-o))
        # clamped at -100 to match torch F.binary_cross_entropy.
        sp_neg = jnp.maximum(-o, 0.0) + jnp.log(1.0 + jnp.exp(-jnp.abs(o)))
        recon_c = jnp.exp(-sp_neg)                                       # sigma(o)
        recon_ref[c * B:(c + 1) * B, :] = recon_c.astype(recon_ref.dtype)
        log_r = jnp.maximum(-sp_neg, -100.0)
        log_1mr = jnp.maximum(-(o + sp_neg), -100.0)
        bce_c = -(x * log_r + one_minus_x * log_1mr)                     # (B, D)

        bce_acc = bce_acc + jnp.sum(bce_c, axis=-1, keepdims=True)
        kl_w = kl_w + logits[:, c:c + 1] * kl_c

    # likelihood = -BCE(recon, xs) with mean reduction over all CB*D elements;
    # elbo_row = likelihood + PRIOR - BETA*kl_row;  L = elbo.view(C, B).T;
    # U_b = sum_c logits[b,c]*L[b,c] + H_b = (likelihood + PRIOR) - BETA*kl_w_b + H_b;
    # loss = -mean_b(U_b)
    per_row = h_ent - BETA * kl_w                                        # (B, 1)
    loss_ref[0, 0] = (jnp.sum(bce_acc * (1.0 / float(C * D)) - per_row)
                      / float(B)) - PRIOR


def init_params(key):
    ks = jax.random.split(key, 8)

    def dense(k, fan_in, fan_out, scale=1.0):
        return (scale * jax.random.normal(k, (fan_in, fan_out), jnp.float32)
                / jnp.sqrt(float(fan_in)))

    w1x = dense(ks[0], D, H)
    w1y = dense(ks[1], C, H)
    b1 = jnp.zeros((1, H), jnp.float32)
    wmu = dense(ks[2], H, Z)
    bmu = jnp.zeros((1, Z), jnp.float32)
    wlv = dense(ks[3], H, Z, scale=0.1)
    blv = jnp.zeros((1, Z), jnp.float32)
    w2z = dense(ks[4], Z, H)
    w2y = dense(ks[5], C, H)
    b2 = jnp.zeros((1, H), jnp.float32)
    wout = dense(ks[6], H, D)
    bout = jnp.zeros((1, D), jnp.float32)
    wc = dense(ks[7], D, C)
    bc = jnp.zeros((1, C), jnp.float32)
    return (w1x, w1y, b1, wmu, bmu, wlv, blv, w2z, w2y, b2, wout, bout, wc, bc)


def pack_params(params):
    """Offline packing: fuse [wmu|wlv], stack all 32-col weights, stack the class
    embeddings and the biases, so the kernel takes 4 weight tensors (6 inputs total)."""
    (w1x, w1y, b1, wmu, bmu, wlv, blv, w2z, w2y, b2, wout, bout, wc, bc) = params
    wmulv = jnp.concatenate([wmu, wlv], axis=1)                     # (H, 2Z)
    w_big = jnp.concatenate([w1x, wmulv, wout, w2z], axis=0)        # (_WBIG_ROWS, 32)
    assert w_big.shape == (_WBIG_ROWS, H)
    w_y = jnp.concatenate([w1y, w2y], axis=0)                       # (2C, H)
    bmulv = jnp.concatenate([bmu, blv], axis=1)                     # (1, 2Z)
    bc_pad = jnp.pad(bc, ((0, 0), (0, H - C)))                      # (1, H)
    bias = jnp.concatenate([b1, bmulv, b2, bout, bc_pad], axis=0)   # (5, 32)
    return (w_big, w_y, wc, bias)


def svi_forward(x, eps, packed):
    """Unlabelled (y=None) SVI forward. Returns (loss, reconstruction)."""
    w_big, w_y, w_c, bias = packed
    vmem = pl.BlockSpec(memory_space=pltpu.MemorySpace.VMEM)
    smem = pl.BlockSpec(memory_space=pltpu.MemorySpace.SMEM)
    recon, loss = pl.pallas_call(
        svi_kernel,
        out_shape=(jax.ShapeDtypeStruct((CB, D), jnp.float32),   # reconstruction
                   jax.ShapeDtypeStruct((1, 1), jnp.float32)),   # scalar loss
        in_specs=[vmem] * 6,
        out_specs=(vmem, smem),
    )(x, eps, w_big, w_y, w_c, bias)
    return loss[0, 0], recon


if __name__ == "__main__":
    key = jax.random.PRNGKey(0)
    kx, keps, kp = jax.random.split(key, 3)
    # BCE targets must be in [0, 1]
    x = jax.random.uniform(kx, (B, D), jnp.float32)
    eps = jax.random.normal(keps, (CB, Z), jnp.float32)   # reparameterization noise
    packed = pack_params(init_params(kp))

    loss, recon = jax.jit(svi_forward)(x, eps, packed)
    jax.block_until_ready((loss, recon))
    assert recon.shape == (CB, D) and loss.shape == ()
    assert bool(jnp.isfinite(loss))
    print("KERNEL_OK")
</pallas_src>

<mosaic_0001>
module attributes {stable_mosaic.version = 11 : i64} {
  func.func @svi_kernel(%arg0: memref<8x32xf32, #tpu.memory_space<vmem>>, %arg1: memref<32x16xf32, #tpu.memory_space<vmem>>, %arg2: memref<112x32xf32, #tpu.memory_space<vmem>>, %arg3: memref<8x32xf32, #tpu.memory_space<vmem>>, %arg4: memref<32x4xf32, #tpu.memory_space<vmem>>, %arg5: memref<5x32xf32, #tpu.memory_space<vmem>>, %arg6: memref<32x32xf32, #tpu.memory_space<vmem>>, %arg7: memref<1x1xf32, #tpu.memory_space<smem>>) attributes {dimension_semantics = [], scalar_prefetch = 0 : i64, scratch_operands = 0 : i64, tpu.core_type = #tpu.core_type<tc>} {
    %c0 = arith.constant 0 : index
    %c0_0 = arith.constant 0 : index
    %0 = vector.load %arg0[%c0, %c0_0] : memref<8x32xf32, #tpu.memory_space<vmem>>, vector<8x32xf32>
    %cst = arith.constant 1.000000e+00 : f32
    %1 = vector.broadcast %cst : f32 to vector<8x32xf32>
    %2 = arith.subf %1, %0 : vector<8x32xf32>
    %c0_1 = arith.constant 0 : index
    %c0_2 = arith.constant 0 : index
    %3 = vector.load %arg2[%c0_1, %c0_2] : memref<112x32xf32, #tpu.memory_space<vmem>>, vector<32x32xf32>
    %c32 = arith.constant 32 : index
    %c0_3 = arith.constant 0 : index
    %4 = vector.load %arg2[%c32, %c0_3] : memref<112x32xf32, #tpu.memory_space<vmem>>, vector<32x32xf32>
    %c64 = arith.constant 64 : index
    %c0_4 = arith.constant 0 : index
    %5 = vector.load %arg2[%c64, %c0_4] : memref<112x32xf32, #tpu.memory_space<vmem>>, vector<32x32xf32>
    %c96 = arith.constant 96 : index
    %c0_5 = arith.constant 0 : index
    %6 = vector.load %arg2[%c96, %c0_5] : memref<112x32xf32, #tpu.memory_space<vmem>>, vector<16x32xf32>
    %c0_6 = arith.constant 0 : index
    %c0_7 = arith.constant 0 : index
    %7 = vector.load %arg5[%c0_6, %c0_7] : memref<5x32xf32, #tpu.memory_space<vmem>>, vector<1x32xf32>
    %c1 = arith.constant 1 : index
    %c0_8 = arith.constant 0 : index
    %8 = vector.load %arg5[%c1, %c0_8] : memref<5x32xf32, #tpu.memory_space<vmem>>, vector<1x32xf32>
    %c2 = arith.constant 2 : index
    %c0_9 = arith.constant 0 : index
    %9 = vector.load %arg5[%c2, %c0_9] : memref<5x32xf32, #tpu.memory_space<vmem>>, vector<1x32xf32>
    %c3 = arith.constant 3 : index
    %c0_10 = arith.constant 0 : index
    %10 = vector.load %arg5[%c3, %c0_10] : memref<5x32xf32, #tpu.memory_space<vmem>>, vector<1x32xf32>
    %c4 = arith.constant 4 : index
    %c0_11 = arith.constant 0 : index
    %11 = vector.load %arg5[%c4, %c0_11] : memref<5x32xf32, #tpu.memory_space<vmem>>, vector<1x4xf32>
    %c0_12 = arith.constant 0 : index
    %c0_13 = arith.constant 0 : index
    %12 = vector.load %arg4[%c0_12, %c0_13] : memref<32x4xf32, #tpu.memory_space<vmem>>, vector<32x4xf32>
    %cst_14 = arith.constant dense<0.000000e+00> : vector<8x4xf32>
    %13 = tpu.matmul %0, %12, %cst_14 {dimension_numbers = #tpu.dot_dimension_numbers<[1], [0], [0], [1], [0, 0, 1, 1], [], []>} : vector<8x32xf32>, vector<32x4xf32>, vector<8x4xf32> -> vector<8x4xf32>
    %14 = vector.broadcast %11 : vector<1x4xf32> to vector<8x4xf32>
    %15 = arith.addf %13, %14 : vector<8x4xf32>
    %cst_15 = arith.constant dense<0xFF800000> : vector<8xf32>
    %16 = vector.multi_reduction <maximumf>, %15, %cst_15 [1] : vector<8x4xf32> to vector<8xf32>
    %17 = vector.shape_cast %16 : vector<8xf32> to vector<8x1xf32>
    %18 = vector.broadcast %17 : vector<8x1xf32> to vector<8x4xf32>
    %19 = arith.subf %15, %18 : vector<8x4xf32>
    %20 = math.exp %19 : vector<8x4xf32>
    %cst_16 = arith.constant dense<0.000000e+00> : vector<8xf32>
    %21 = vector.multi_reduction <add>, %20, %cst_16 [1] : vector<8x4xf32> to vector<8xf32>
    %22 = vector.shape_cast %21 : vector<8xf32> to vector<8x1xf32>
    %23 = math.log %22 : vector<8x1xf32>
    %24 = vector.broadcast %23 : vector<8x1xf32> to vector<8x4xf32>
    %25 = arith.subf %19, %24 : vector<8x4xf32>
    %26 = math.exp %25 : vector<8x4xf32>
    %27 = arith.mulf %26, %25 : vector<8x4xf32>
    %cst_17 = arith.constant dense<0.000000e+00> : vector<8xf32>
    %28 = vector.multi_reduction <add>, %27, %cst_17 [1] : vector<8x4xf32> to vector<8xf32>
    %29 = vector.shape_cast %28 : vector<8xf32> to vector<8x1xf32>
    %cst_18 = arith.constant 0.000000e+00 : f32
    %30 = vector.broadcast %cst_18 : f32 to vector<8x1xf32>
    %31 = arith.subf %30, %29 : vector<8x1xf32>
    %cst_19 = arith.constant dense<0.000000e+00> : vector<8x32xf32>
    %32 = tpu.matmul %0, %3, %cst_19 {dimension_numbers = #tpu.dot_dimension_numbers<[1], [0], [0], [1], [0, 0, 1, 1], [], []>} : vector<8x32xf32>, vector<32x32xf32>, vector<8x32xf32> -> vector<8x32xf32>
    %33 = vector.broadcast %7 : vector<1x32xf32> to vector<8x32xf32>
    %34 = arith.addf %32, %33 : vector<8x32xf32>
    %cst_20 = arith.constant 0.000000e+00 : f32
    %35 = vector.broadcast %cst_20 : f32 to vector<8x1xf32>
    %cst_21 = arith.constant 0.000000e+00 : f32
    %36 = vector.broadcast %cst_21 : f32 to vector<8x1xf32>
    %c0_22 = arith.constant 0 : index
    %c0_23 = arith.constant 0 : index
    %37 = vector.load %arg3[%c0_22, %c0_23] : memref<8x32xf32, #tpu.memory_space<vmem>>, vector<1x32xf32>
    %c4_24 = arith.constant 4 : index
    %c0_25 = arith.constant 0 : index
    %38 = vector.load %arg3[%c4_24, %c0_25] : memref<8x32xf32, #tpu.memory_space<vmem>>, vector<1x32xf32>
    %39 = vector.broadcast %37 : vector<1x32xf32> to vector<8x32xf32>
    %40 = arith.addf %34, %39 : vector<8x32xf32>
    %cst_26 = arith.constant 0.000000e+00 : f32
    %41 = vector.broadcast %cst_26 : f32 to vector<8x32xf32>
    %42 = arith.maximumf %40, %41 : vector<8x32xf32>
    %cst_27 = arith.constant dense<0.000000e+00> : vector<8x32xf32>
    %43 = tpu.matmul %42, %4, %cst_27 {dimension_numbers = #tpu.dot_dimension_numbers<[1], [0], [0], [1], [0, 0, 1, 1], [], []>} : vector<8x32xf32>, vector<32x32xf32>, vector<8x32xf32> -> vector<8x32xf32>
    %44 = vector.broadcast %8 : vector<1x32xf32> to vector<8x32xf32>
    %45 = arith.addf %43, %44 : vector<8x32xf32>
    %46 = vector.extract_strided_slice %45 {offsets = [0, 0], sizes = [8, 16], strides = [1, 1]} : vector<8x32xf32> to vector<8x16xf32>
    %47 = vector.extract_strided_slice %45 {offsets = [0, 16], sizes = [8, 16], strides = [1, 1]} : vector<8x32xf32> to vector<8x16xf32>
    %c0_28 = arith.constant 0 : index
    %c0_29 = arith.constant 0 : index
    %48 = vector.load %arg1[%c0_28, %c0_29] : memref<32x16xf32, #tpu.memory_space<vmem>>, vector<8x16xf32>
    %cst_30 = arith.constant 5.000000e-01 : f32
    %49 = vector.broadcast %cst_30 : f32 to vector<8x16xf32>
    %50 = arith.mulf %49, %47 : vector<8x16xf32>
    %51 = math.exp %50 : vector<8x16xf32>
    %52 = arith.mulf %48, %51 : vector<8x16xf32>
    %53 = arith.addf %46, %52 : vector<8x16xf32>
    %cst_31 = arith.constant 1.000000e+00 : f32
    %54 = vector.broadcast %cst_31 : f32 to vector<8x16xf32>
    %55 = arith.addf %54, %47 : vector<8x16xf32>
    %56 = arith.mulf %46, %46 : vector<8x16xf32>
    %57 = arith.subf %55, %56 : vector<8x16xf32>
    %58 = math.exp %47 : vector<8x16xf32>
    %59 = arith.subf %57, %58 : vector<8x16xf32>
    %cst_32 = arith.constant dense<0.000000e+00> : vector<8xf32>
    %60 = vector.multi_reduction <add>, %59, %cst_32 [1] : vector<8x16xf32> to vector<8xf32>
    %61 = vector.shape_cast %60 : vector<8xf32> to vector<8x1xf32>
    %cst_33 = arith.constant -5.000000e-01 : f32
    %62 = vector.broadcast %cst_33 : f32 to vector<8x1xf32>
    %63 = arith.mulf %62, %61 : vector<8x1xf32>
    %cst_34 = arith.constant dense<0.000000e+00> : vector<8x32xf32>
    %64 = tpu.matmul %53, %6, %cst_34 {dimension_numbers = #tpu.dot_dimension_numbers<[1], [0], [0], [1], [0, 0, 1, 1], [], []>} : vector<8x16xf32>, vector<16x32xf32>, vector<8x32xf32> -> vector<8x32xf32>
    %65 = vector.broadcast %38 : vector<1x32xf32> to vector<8x32xf32>
    %66 = arith.addf %64, %65 : vector<8x32xf32>
    %67 = vector.broadcast %9 : vector<1x32xf32> to vector<8x32xf32>
    %68 = arith.addf %66, %67 : vector<8x32xf32>
    %cst_35 = arith.constant 0.000000e+00 : f32
    %69 = vector.broadcast %cst_35 : f32 to vector<8x32xf32>
    %70 = arith.maximumf %68, %69 : vector<8x32xf32>
    %cst_36 = arith.constant dense<0.000000e+00> : vector<8x32xf32>
    %71 = tpu.matmul %70, %5, %cst_36 {dimension_numbers = #tpu.dot_dimension_numbers<[1], [0], [0], [1], [0, 0, 1, 1], [], []>} : vector<8x32xf32>, vector<32x32xf32>, vector<8x32xf32> -> vector<8x32xf32>
    %72 = vector.broadcast %10 : vector<1x32xf32> to vector<8x32xf32>
    %73 = arith.addf %71, %72 : vector<8x32xf32>
    %cst_37 = arith.constant 0.000000e+00 : f32
    %74 = vector.broadcast %cst_37 : f32 to vector<8x32xf32>
    %75 = arith.subf %74, %73 : vector<8x32xf32>
    %cst_38 = arith.constant 0.000000e+00 : f32
    %76 = vector.broadcast %cst_38 : f32 to vector<8x32xf32>
    %77 = arith.maximumf %75, %76 : vector<8x32xf32>
    %78 = math.absf %73 : vector<8x32xf32>
    %cst_39 = arith.constant 0.000000e+00 : f32
    %79 = vector.broadcast %cst_39 : f32 to vector<8x32xf32>
    %80 = arith.subf %79, %78 : vector<8x32xf32>
    %81 = math.exp %80 : vector<8x32xf32>
    %cst_40 = arith.constant 1.000000e+00 : f32
    %82 = vector.broadcast %cst_40 : f32 to vector<8x32xf32>
    %83 = arith.addf %82, %81 : vector<8x32xf32>
    %84 = math.log %83 : vector<8x32xf32>
    %85 = arith.addf %77, %84 : vector<8x32xf32>
    %cst_41 = arith.constant 0.000000e+00 : f32
    %86 = vector.broadcast %cst_41 : f32 to vector<8x32xf32>
    %87 = arith.subf %86, %85 : vector<8x32xf32>
    %88 = math.exp %87 : vector<8x32xf32>
    %c0_42 = arith.constant 0 : index
    %c0_43 = arith.constant 0 : index
    %89 = vector.load %arg6[%c0_42, %c0_43] : memref<32x32xf32, #tpu.memory_space<vmem>>, vector<8x32xf32>
    tpu.vector_store %arg6[%c0_42, %c0_43], %88 {strides = array<i32>} : memref<32x32xf32, #tpu.memory_space<vmem>>, vector<8x32xf32>,
    %cst_44 = arith.constant 0.000000e+00 : f32
    %90 = vector.broadcast %cst_44 : f32 to vector<8x32xf32>
    %91 = arith.subf %90, %85 : vector<8x32xf32>
    %cst_45 = arith.constant -1.000000e+02 : f32
    %92 = vector.broadcast %cst_45 : f32 to vector<8x32xf32>
    %93 = arith.maximumf %91, %92 : vector<8x32xf32>
    %94 = arith.addf %73, %85 : vector<8x32xf32>
    %cst_46 = arith.constant 0.000000e+00 : f32
    %95 = vector.broadcast %cst_46 : f32 to vector<8x32xf32>
    %96 = arith.subf %95, %94 : vector<8x32xf32>
    %cst_47 = arith.constant -1.000000e+02 : f32
    %97 = vector.broadcast %cst_47 : f32 to vector<8x32xf32>
    %98 = arith.maximumf %96, %97 : vector<8x32xf32>
    %99 = arith.mulf %0, %93 : vector<8x32xf32>
    %100 = arith.mulf %2, %98 : vector<8x32xf32>
    %101 = arith.addf %99, %100 : vector<8x32xf32>
    %cst_48 = arith.constant 0.000000e+00 : f32
    %102 = vector.broadcast %cst_48 : f32 to vector<8x32xf32>
    %103 = arith.subf %102, %101 : vector<8x32xf32>
    %cst_49 = arith.constant dense<0.000000e+00> : vector<8xf32>
    %104 = vector.multi_reduction <add>, %103, %cst_49 [1] : vector<8x32xf32> to vector<8xf32>
    %105 = vector.shape_cast %104 : vector<8xf32> to vector<8x1xf32>
    %106 = arith.addf %35, %105 : vector<8x1xf32>
    %107 = vector.extract_strided_slice %26 {offsets = [0, 0], sizes = [8, 1], strides = [1, 1]} : vector<8x4xf32> to vector<8x1xf32>
    %108 = arith.mulf %107, %63 : vector<8x1xf32>
    %109 = arith.addf %36, %108 : vector<8x1xf32>
    %c1_50 = arith.constant 1 : index
    %c0_51 = arith.constant 0 : index
    %110 = vector.load %arg3[%c1_50, %c0_51] : memref<8x32xf32, #tpu.memory_space<vmem>>, vector<1x32xf32>
    %c5 = arith.constant 5 : index
    %c0_52 = arith.constant 0 : index
    %111 = vector.load %arg3[%c5, %c0_52] : memref<8x32xf32, #tpu.memory_space<vmem>>, vector<1x32xf32>
    %112 = vector.broadcast %110 : vector<1x32xf32> to vector<8x32xf32>
    %113 = arith.addf %34, %112 : vector<8x32xf32>
    %cst_53 = arith.constant 0.000000e+00 : f32
    %114 = vector.broadcast %cst_53 : f32 to vector<8x32xf32>
    %115 = arith.maximumf %113, %114 : vector<8x32xf32>
    %cst_54 = arith.constant dense<0.000000e+00> : vector<8x32xf32>
    %116 = tpu.matmul %115, %4, %cst_54 {dimension_numbers = #tpu.dot_dimension_numbers<[1], [0], [0], [1], [0, 0, 1, 1], [], []>} : vector<8x32xf32>, vector<32x32xf32>, vector<8x32xf32> -> vector<8x32xf32>
    %117 = vector.broadcast %8 : vector<1x32xf32> to vector<8x32xf32>
    %118 = arith.addf %116, %117 : vector<8x32xf32>
    %119 = vector.extract_strided_slice %118 {offsets = [0, 0], sizes = [8, 16], strides = [1, 1]} : vector<8x32xf32> to vector<8x16xf32>
    %120 = vector.extract_strided_slice %118 {offsets = [0, 16], sizes = [8, 16], strides = [1, 1]} : vector<8x32xf32> to vector<8x16xf32>
    %c8 = arith.constant 8 : index
    %c0_55 = arith.constant 0 : index
    %121 = vector.load %arg1[%c8, %c0_55] : memref<32x16xf32, #tpu.memory_space<vmem>>, vector<8x16xf32>
    %cst_56 = arith.constant 5.000000e-01 : f32
    %122 = vector.broadcast %cst_56 : f32 to vector<8x16xf32>
    %123 = arith.mulf %122, %120 : vector<8x16xf32>
    %124 = math.exp %123 : vector<8x16xf32>
    %125 = arith.mulf %121, %124 : vector<8x16xf32>
    %126 = arith.addf %119, %125 : vector<8x16xf32>
    %cst_57 = arith.constant 1.000000e+00 : f32
    %127 = vector.broadcast %cst_57 : f32 to vector<8x16xf32>
    %128 = arith.addf %127, %120 : vector<8x16xf32>
    %129 = arith.mulf %119, %119 : vector<8x16xf32>
    %130 = arith.subf %128, %129 : vector<8x16xf32>
    %131 = math.exp %120 : vector<8x16xf32>
    %132 = arith.subf %130, %131 : vector<8x16xf32>
    %cst_58 = arith.constant dense<0.000000e+00> : vector<8xf32>
    %133 = vector.multi_reduction <add>, %132, %cst_58 [1] : vector<8x16xf32> to vector<8xf32>
    %134 = vector.shape_cast %133 : vector<8xf32> to vector<8x1xf32>
    %cst_59 = arith.constant -5.000000e-01 : f32
    %135 = vector.broadcast %cst_59 : f32 to vector<8x1xf32>
    %136 = arith.mulf %135, %134 : vector<8x1xf32>
    %cst_60 = arith.constant dense<0.000000e+00> : vector<8x32xf32>
    %137 = tpu.matmul %126, %6, %cst_60 {dimension_numbers = #tpu.dot_dimension_numbers<[1], [0], [0], [1], [0, 0, 1, 1], [], []>} : vector<8x16xf32>, vector<16x32xf32>, vector<8x32xf32> -> vector<8x32xf32>
    %138 = vector.broadcast %111 : vector<1x32xf32> to vector<8x32xf32>
    %139 = arith.addf %137, %138 : vector<8x32xf32>
    %140 = vector.broadcast %9 : vector<1x32xf32> to vector<8x32xf32>
    %141 = arith.addf %139, %140 : vector<8x32xf32>
    %cst_61 = arith.constant 0.000000e+00 : f32
    %142 = vector.broadcast %cst_61 : f32 to vector<8x32xf32>
    %143 = arith.maximumf %141, %142 : vector<8x32xf32>
    %cst_62 = arith.constant dense<0.000000e+00> : vector<8x32xf32>
    %144 = tpu.matmul %143, %5, %cst_62 {dimension_numbers = #tpu.dot_dimension_numbers<[1], [0], [0], [1], [0, 0, 1, 1], [], []>} : vector<8x32xf32>, vector<32x32xf32>, vector<8x32xf32> -> vector<8x32xf32>
    %145 = vector.broadcast %10 : vector<1x32xf32> to vector<8x32xf32>
    %146 = arith.addf %144, %145 : vector<8x32xf32>
    %cst_63 = arith.constant 0.000000e+00 : f32
    %147 = vector.broadcast %cst_63 : f32 to vector<8x32xf32>
    %148 = arith.subf %147, %146 : vector<8x32xf32>
    %cst_64 = arith.constant 0.000000e+00 : f32
    %149 = vector.broadcast %cst_64 : f32 to vector<8x32xf32>
    %150 = arith.maximumf %148, %149 : vector<8x32xf32>
    %151 = math.absf %146 : vector<8x32xf32>
    %cst_65 = arith.constant 0.000000e+00 : f32
    %152 = vector.broadcast %cst_65 : f32 to vector<8x32xf32>
    %153 = arith.subf %152, %151 : vector<8x32xf32>
    %154 = math.exp %153 : vector<8x32xf32>
    %cst_66 = arith.constant 1.000000e+00 : f32
    %155 = vector.broadcast %cst_66 : f32 to vector<8x32xf32>
    %156 = arith.addf %155, %154 : vector<8x32xf32>
    %157 = math.log %156 : vector<8x32xf32>
    %158 = arith.addf %150, %157 : vector<8x32xf32>
    %cst_67 = arith.constant 0.000000e+00 : f32
    %159 = vector.broadcast %cst_67 : f32 to vector<8x32xf32>
    %160 = arith.subf %159, %158 : vector<8x32xf32>
    %161 = math.exp %160 : vector<8x32xf32>
    %c8_68 = arith.constant 8 : index
    %c0_69 = arith.constant 0 : index
    %162 = vector.load %arg6[%c8_68, %c0_69] : memref<32x32xf32, #tpu.memory_space<vmem>>, vector<8x32xf32>
    tpu.vector_store %arg6[%c8_68, %c0_69], %161 {strides = array<i32>} : memref<32x32xf32, #tpu.memory_space<vmem>>, vector<8x32xf32>,
    %cst_70 = arith.constant 0.000000e+00 : f32
    %163 = vector.broadcast %cst_70 : f32 to vector<8x32xf32>
    %164 = arith.subf %163, %158 : vector<8x32xf32>
    %cst_71 = arith.constant -1.000000e+02 : f32
    %165 = vector.broadcast %cst_71 : f32 to vector<8x32xf32>
    %166 = arith.maximumf %164, %165 : vector<8x32xf32>
    %167 = arith.addf %146, %158 : vector<8x32xf32>
    %cst_72 = arith.constant 0.000000e+00 : f32
    %168 = vector.broadcast %cst_72 : f32 to vector<8x32xf32>
    %169 = arith.subf %168, %167 : vector<8x32xf32>
    %cst_73 = arith.constant -1.000000e+02 : f32
    %170 = vector.broadcast %cst_73 : f32 to vector<8x32xf32>
    %171 = arith.maximumf %169, %170 : vector<8x32xf32>
    %172 = arith.mulf %0, %166 : vector<8x32xf32>
    %173 = arith.mulf %2, %171 : vector<8x32xf32>
    %174 = arith.addf %172, %173 : vector<8x32xf32>
    %cst_74 = arith.constant 0.000000e+00 : f32
    %175 = vector.broadcast %cst_74 : f32 to vector<8x32xf32>
    %176 = arith.subf %175, %174 : vector<8x32xf32>
    %cst_75 = arith.constant dense<0.000000e+00> : vector<8xf32>
    %177 = vector.multi_reduction <add>, %176, %cst_75 [1] : vector<8x32xf32> to vector<8xf32>
    %178 = vector.shape_cast %177 : vector<8xf32> to vector<8x1xf32>
    %179 = arith.addf %106, %178 : vector<8x1xf32>
    %180 = vector.extract_strided_slice %26 {offsets = [0, 1], sizes = [8, 1], strides = [1, 1]} : vector<8x4xf32> to vector<8x1xf32>
    %181 = arith.mulf %180, %136 : vector<8x1xf32>
    %182 = arith.addf %109, %181 : vector<8x1xf32>
    %c2_76 = arith.constant 2 : index
    %c0_77 = arith.constant 0 : index
    %183 = vector.load %arg3[%c2_76, %c0_77] : memref<8x32xf32, #tpu.memory_space<vmem>>, vector<1x32xf32>
    %c6 = arith.constant 6 : index
    %c0_78 = arith.constant 0 : index
    %184 = vector.load %arg3[%c6, %c0_78] : memref<8x32xf32, #tpu.memory_space<vmem>>, vector<1x32xf32>
    %185 = vector.broadcast %183 : vector<1x32xf32> to vector<8x32xf32>
    %186 = arith.addf %34, %185 : vector<8x32xf32>
    %cst_79 = arith.constant 0.000000e+00 : f32
    %187 = vector.broadcast %cst_79 : f32 to vector<8x32xf32>
    %188 = arith.maximumf %186, %187 : vector<8x32xf32>
    %cst_80 = arith.constant dense<0.000000e+00> : vector<8x32xf32>
    %189 = tpu.matmul %188, %4, %cst_80 {dimension_numbers = #tpu.dot_dimension_numbers<[1], [0], [0], [1], [0, 0, 1, 1], [], []>} : vector<8x32xf32>, vector<32x32xf32>, vector<8x32xf32> -> vector<8x32xf32>
    %190 = vector.broadcast %8 : vector<1x32xf32> to vector<8x32xf32>
    %191 = arith.addf %189, %190 : vector<8x32xf32>
    %192 = vector.extract_strided_slice %191 {offsets = [0, 0], sizes = [8, 16], strides = [1, 1]} : vector<8x32xf32> to vector<8x16xf32>
    %193 = vector.extract_strided_slice %191 {offsets = [0, 16], sizes = [8, 16], strides = [1, 1]} : vector<8x32xf32> to vector<8x16xf32>
    %c16 = arith.constant 16 : index
    %c0_81 = arith.constant 0 : index
    %194 = vector.load %arg1[%c16, %c0_81] : memref<32x16xf32, #tpu.memory_space<vmem>>, vector<8x16xf32>
    %cst_82 = arith.constant 5.000000e-01 : f32
    %195 = vector.broadcast %cst_82 : f32 to vector<8x16xf32>
    %196 = arith.mulf %195, %193 : vector<8x16xf32>
    %197 = math.exp %196 : vector<8x16xf32>
    %198 = arith.mulf %194, %197 : vector<8x16xf32>
    %199 = arith.addf %192, %198 : vector<8x16xf32>
    %cst_83 = arith.constant 1.000000e+00 : f32
    %200 = vector.broadcast %cst_83 : f32 to vector<8x16xf32>
    %201 = arith.addf %200, %193 : vector<8x16xf32>
    %202 = arith.mulf %192, %192 : vector<8x16xf32>
    %203 = arith.subf %201, %202 : vector<8x16xf32>
    %204 = math.exp %193 : vector<8x16xf32>
    %205 = arith.subf %203, %204 : vector<8x16xf32>
    %cst_84 = arith.constant dense<0.000000e+00> : vector<8xf32>
    %206 = vector.multi_reduction <add>, %205, %cst_84 [1] : vector<8x16xf32> to vector<8xf32>
    %207 = vector.shape_cast %206 : vector<8xf32> to vector<8x1xf32>
    %cst_85 = arith.constant -5.000000e-01 : f32
    %208 = vector.broadcast %cst_85 : f32 to vector<8x1xf32>
    %209 = arith.mulf %208, %207 : vector<8x1xf32>
    %cst_86 = arith.constant dense<0.000000e+00> : vector<8x32xf32>
    %210 = tpu.matmul %199, %6, %cst_86 {dimension_numbers = #tpu.dot_dimension_numbers<[1], [0], [0], [1], [0, 0, 1, 1], [], []>} : vector<8x16xf32>, vector<16x32xf32>, vector<8x32xf32> -> vector<8x32xf32>
    %211 = vector.broadcast %184 : vector<1x32xf32> to vector<8x32xf32>
    %212 = arith.addf %210, %211 : vector<8x32xf32>
    %213 = vector.broadcast %9 : vector<1x32xf32> to vector<8x32xf32>
    %214 = arith.addf %212, %213 : vector<8x32xf32>
    %cst_87 = arith.constant 0.000000e+00 : f32
    %215 = vector.broadcast %cst_87 : f32 to vector<8x32xf32>
    %216 = arith.maximumf %214, %215 : vector<8x32xf32>
    %cst_88 = arith.constant dense<0.000000e+00> : vector<8x32xf32>
    %217 = tpu.matmul %216, %5, %cst_88 {dimension_numbers = #tpu.dot_dimension_numbers<[1], [0], [0], [1], [0, 0, 1, 1], [], []>} : vector<8x32xf32>, vector<32x32xf32>, vector<8x32xf32> -> vector<8x32xf32>
    %218 = vector.broadcast %10 : vector<1x32xf32> to vector<8x32xf32>
    %219 = arith.addf %217, %218 : vector<8x32xf32>
    %cst_89 = arith.constant 0.000000e+00 : f32
    %220 = vector.broadcast %cst_89 : f32 to vector<8x32xf32>
    %221 = arith.subf %220, %219 : vector<8x32xf32>
    %cst_90 = arith.constant 0.000000e+00 : f32
    %222 = vector.broadcast %cst_90 : f32 to vector<8x32xf32>
    %223 = arith.maximumf %221, %222 : vector<8x32xf32>
    %224 = math.absf %219 : vector<8x32xf32>
    %cst_91 = arith.constant 0.000000e+00 : f32
    %225 = vector.broadcast %cst_91 : f32 to vector<8x32xf32>
    %226 = arith.subf %225, %224 : vector<8x32xf32>
    %227 = math.exp %226 : vector<8x32xf32>
    %cst_92 = arith.constant 1.000000e+00 : f32
    %228 = vector.broadcast %cst_92 : f32 to vector<8x32xf32>
    %229 = arith.addf %228, %227 : vector<8x32xf32>
    %230 = math.log %229 : vector<8x32xf32>
    %231 = arith.addf %223, %230 : vector<8x32xf32>
    %cst_93 = arith.constant 0.000000e+00 : f32
    %232 = vector.broadcast %cst_93 : f32 to vector<8x32xf32>
    %233 = arith.subf %232, %231 : vector<8x32xf32>
    %234 = math.exp %233 : vector<8x32xf32>
    %c16_94 = arith.constant 16 : index
    %c0_95 = arith.constant 0 : index
    %235 = vector.load %arg6[%c16_94, %c0_95] : memref<32x32xf32, #tpu.memory_space<vmem>>, vector<8x32xf32>
    tpu.vector_store %arg6[%c16_94, %c0_95], %234 {strides = array<i32>} : memref<32x32xf32, #tpu.memory_space<vmem>>, vector<8x32xf32>,
    %cst_96 = arith.constant 0.000000e+00 : f32
    %236 = vector.broadcast %cst_96 : f32 to vector<8x32xf32>
    %237 = arith.subf %236, %231 : vector<8x32xf32>
    %cst_97 = arith.constant -1.000000e+02 : f32
    %238 = vector.broadcast %cst_97 : f32 to vector<8x32xf32>
    %239 = arith.maximumf %237, %238 : vector<8x32xf32>
    %240 = arith.addf %219, %231 : vector<8x32xf32>
    %cst_98 = arith.constant 0.000000e+00 : f32
    %241 = vector.broadcast %cst_98 : f32 to vector<8x32xf32>
    %242 = arith.subf %241, %240 : vector<8x32xf32>
    %cst_99 = arith.constant -1.000000e+02 : f32
    %243 = vector.broadcast %cst_99 : f32 to vector<8x32xf32>
    %244 = arith.maximumf %242, %243 : vector<8x32xf32>
    %245 = arith.mulf %0, %239 : vector<8x32xf32>
    %246 = arith.mulf %2, %244 : vector<8x32xf32>
    %247 = arith.addf %245, %246 : vector<8x32xf32>
    %cst_100 = arith.constant 0.000000e+00 : f32
    %248 = vector.broadcast %cst_100 : f32 to vector<8x32xf32>
    %249 = arith.subf %248, %247 : vector<8x32xf32>
    %cst_101 = arith.constant dense<0.000000e+00> : vector<8xf32>
    %250 = vector.multi_reduction <add>, %249, %cst_101 [1] : vector<8x32xf32> to vector<8xf32>
    %251 = vector.shape_cast %250 : vector<8xf32> to vector<8x1xf32>
    %252 = arith.addf %179, %251 : vector<8x1xf32>
    %253 = vector.extract_strided_slice %26 {offsets = [0, 2], sizes = [8, 1], strides = [1, 1]} : vector<8x4xf32> to vector<8x1xf32>
    %254 = arith.mulf %253, %209 : vector<8x1xf32>
    %255 = arith.addf %182, %254 : vector<8x1xf32>
    %c3_102 = arith.constant 3 : index
    %c0_103 = arith.constant 0 : index
    %256 = vector.load %arg3[%c3_102, %c0_103] : memref<8x32xf32, #tpu.memory_space<vmem>>, vector<1x32xf32>
    %c7 = arith.constant 7 : index
    %c0_104 = arith.constant 0 : index
    %257 = vector.load %arg3[%c7, %c0_104] : memref<8x32xf32, #tpu.memory_space<vmem>>, vector<1x32xf32>
    %258 = vector.broadcast %256 : vector<1x32xf32> to vector<8x32xf32>
    %259 = arith.addf %34, %258 : vector<8x32xf32>
    %cst_105 = arith.constant 0.000000e+00 : f32
    %260 = vector.broadcast %cst_105 : f32 to vector<8x32xf32>
    %261 = arith.maximumf %259, %260 : vector<8x32xf32>
    %cst_106 = arith.constant dense<0.000000e+00> : vector<8x32xf32>
    %262 = tpu.matmul %261, %4, %cst_106 {dimension_numbers = #tpu.dot_dimension_numbers<[1], [0], [0], [1], [0, 0, 1, 1], [], []>} : vector<8x32xf32>, vector<32x32xf32>, vector<8x32xf32> -> vector<8x32xf32>
    %263 = vector.broadcast %8 : vector<1x32xf32> to vector<8x32xf32>
    %264 = arith.addf %262, %263 : vector<8x32xf32>
    %265 = vector.extract_strided_slice %264 {offsets = [0, 0], sizes = [8, 16], strides = [1, 1]} : vector<8x32xf32> to vector<8x16xf32>
    %266 = vector.extract_strided_slice %264 {offsets = [0, 16], sizes = [8, 16], strides = [1, 1]} : vector<8x32xf32> to vector<8x16xf32>
    %c24 = arith.constant 24 : index
    %c0_107 = arith.constant 0 : index
    %267 = vector.load %arg1[%c24, %c0_107] : memref<32x16xf32, #tpu.memory_space<vmem>>, vector<8x16xf32>
    %cst_108 = arith.constant 5.000000e-01 : f32
    %268 = vector.broadcast %cst_108 : f32 to vector<8x16xf32>
    %269 = arith.mulf %268, %266 : vector<8x16xf32>
    %270 = math.exp %269 : vector<8x16xf32>
    %271 = arith.mulf %267, %270 : vector<8x16xf32>
    %272 = arith.addf %265, %271 : vector<8x16xf32>
    %cst_109 = arith.constant 1.000000e+00 : f32
    %273 = vector.broadcast %cst_109 : f32 to vector<8x16xf32>
    %274 = arith.addf %273, %266 : vector<8x16xf32>
    %275 = arith.mulf %265, %265 : vector<8x16xf32>
    %276 = arith.subf %274, %275 : vector<8x16xf32>
    %277 = math.exp %266 : vector<8x16xf32>
    %278 = arith.subf %276, %277 : vector<8x16xf32>
    %cst_110 = arith.constant dense<0.000000e+00> : vector<8xf32>
    %279 = vector.multi_reduction <add>, %278, %cst_110 [1] : vector<8x16xf32> to vector<8xf32>
    %280 = vector.shape_cast %279 : vector<8xf32> to vector<8x1xf32>
    %cst_111 = arith.constant -5.000000e-01 : f32
    %281 = vector.broadcast %cst_111 : f32 to vector<8x1xf32>
    %282 = arith.mulf %281, %280 : vector<8x1xf32>
    %cst_112 = arith.constant dense<0.000000e+00> : vector<8x32xf32>
    %283 = tpu.matmul %272, %6, %cst_112 {dimension_numbers = #tpu.dot_dimension_numbers<[1], [0], [0], [1], [0, 0, 1, 1], [], []>} : vector<8x16xf32>, vector<16x32xf32>, vector<8x32xf32> -> vector<8x32xf32>
    %284 = vector.broadcast %257 : vector<1x32xf32> to vector<8x32xf32>
    %285 = arith.addf %283, %284 : vector<8x32xf32>
    %286 = vector.broadcast %9 : vector<1x32xf32> to vector<8x32xf32>
    %287 = arith.addf %285, %286 : vector<8x32xf32>
    %cst_113 = arith.constant 0.000000e+00 : f32
    %288 = vector.broadcast %cst_113 : f32 to vector<8x32xf32>
    %289 = arith.maximumf %287, %288 : vector<8x32xf32>
    %cst_114 = arith.constant dense<0.000000e+00> : vector<8x32xf32>
    %290 = tpu.matmul %289, %5, %cst_114 {dimension_numbers = #tpu.dot_dimension_numbers<[1], [0], [0], [1], [0, 0, 1, 1], [], []>} : vector<8x32xf32>, vector<32x32xf32>, vector<8x32xf32> -> vector<8x32xf32>
    %291 = vector.broadcast %10 : vector<1x32xf32> to vector<8x32xf32>
    %292 = arith.addf %290, %291 : vector<8x32xf32>
    %cst_115 = arith.constant 0.000000e+00 : f32
    %293 = vector.broadcast %cst_115 : f32 to vector<8x32xf32>
    %294 = arith.subf %293, %292 : vector<8x32xf32>
    %cst_116 = arith.constant 0.000000e+00 : f32
    %295 = vector.broadcast %cst_116 : f32 to vector<8x32xf32>
    %296 = arith.maximumf %294, %295 : vector<8x32xf32>
    %297 = math.absf %292 : vector<8x32xf32>
    %cst_117 = arith.constant 0.000000e+00 : f32
    %298 = vector.broadcast %cst_117 : f32 to vector<8x32xf32>
    %299 = arith.subf %298, %297 : vector<8x32xf32>
    %300 = math.exp %299 : vector<8x32xf32>
    %cst_118 = arith.constant 1.000000e+00 : f32
    %301 = vector.broadcast %cst_118 : f32 to vector<8x32xf32>
    %302 = arith.addf %301, %300 : vector<8x32xf32>
    %303 = math.log %302 : vector<8x32xf32>
    %304 = arith.addf %296, %303 : vector<8x32xf32>
    %cst_119 = arith.constant 0.000000e+00 : f32
    %305 = vector.broadcast %cst_119 : f32 to vector<8x32xf32>
    %306 = arith.subf %305, %304 : vector<8x32xf32>
    %307 = math.exp %306 : vector<8x32xf32>
    %c24_120 = arith.constant 24 : index
    %c0_121 = arith.constant 0 : index
    %308 = vector.load %arg6[%c24_120, %c0_121] : memref<32x32xf32, #tpu.memory_space<vmem>>, vector<8x32xf32>
    tpu.vector_store %arg6[%c24_120, %c0_121], %307 {strides = array<i32>} : memref<32x32xf32, #tpu.memory_space<vmem>>, vector<8x32xf32>,
    %cst_122 = arith.constant 0.000000e+00 : f32
    %309 = vector.broadcast %cst_122 : f32 to vector<8x32xf32>
    %310 = arith.subf %309, %304 : vector<8x32xf32>
    %cst_123 = arith.constant -1.000000e+02 : f32
    %311 = vector.broadcast %cst_123 : f32 to vector<8x32xf32>
    %312 = arith.maximumf %310, %311 : vector<8x32xf32>
    %313 = arith.addf %292, %304 : vector<8x32xf32>
    %cst_124 = arith.constant 0.000000e+00 : f32
    %314 = vector.broadcast %cst_124 : f32 to vector<8x32xf32>
    %315 = arith.subf %314, %313 : vector<8x32xf32>
    %cst_125 = arith.constant -1.000000e+02 : f32
    %316 = vector.broadcast %cst_125 : f32 to vector<8x32xf32>
    %317 = arith.maximumf %315, %316 : vector<8x32xf32>
    %318 = arith.mulf %0, %312 : vector<8x32xf32>
    %319 = arith.mulf %2, %317 : vector<8x32xf32>
    %320 = arith.addf %318, %319 : vector<8x32xf32>
    %cst_126 = arith.constant 0.000000e+00 : f32
    %321 = vector.broadcast %cst_126 : f32 to vector<8x32xf32>
    %322 = arith.subf %321, %320 : vector<8x32xf32>
    %cst_127 = arith.constant dense<0.000000e+00> : vector<8xf32>
    %323 = vector.multi_reduction <add>, %322, %cst_127 [1] : vector<8x32xf32> to vector<8xf32>
    %324 = vector.shape_cast %323 : vector<8xf32> to vector<8x1xf32>
    %325 = arith.addf %252, %324 : vector<8x1xf32>
    %326 = vector.extract_strided_slice %26 {offsets = [0, 3], sizes = [8, 1], strides = [1, 1]} : vector<8x4xf32> to vector<8x1xf32>
    %327 = arith.mulf %326, %282 : vector<8x1xf32>
    %328 = arith.addf %255, %327 : vector<8x1xf32>
    %cst_128 = arith.constant 1.000000e+00 : f32
    %329 = vector.broadcast %cst_128 : f32 to vector<8x1xf32>
    %330 = arith.mulf %329, %328 : vector<8x1xf32>
    %331 = arith.subf %31, %330 : vector<8x1xf32>
    %cst_129 = arith.constant 7.812500e-03 : f32
    %332 = vector.broadcast %cst_129 : f32 to vector<8x1xf32>
    %333 = arith.mulf %325, %332 : vector<8x1xf32>
    %334 = arith.subf %333, %331 : vector<8x1xf32>
    %335 = vector.shape_cast %334 : vector<8x1xf32> to vector<1x8x1xf32>
    %cst_130 = arith.constant dense<0.000000e+00> : vector<1xf32>
    %336 = vector.multi_reduction <add>, %335, %cst_130 [1, 2] : vector<1x8x1xf32> to vector<1xf32>
    %337 = vector.shape_cast %336 : vector<1xf32> to vector<1x1x1xf32>
    %338 = vector.extract %337[0, 0, 0] : f32 from vector<1x1x1xf32>
    %cst_131 = arith.constant 8.000000e+00 : f32
    %339 = arith.divf %338, %cst_131 : f32
    %cst_132 = arith.constant -1.38629436 : f32
    %340 = arith.subf %339, %cst_132 : f32
    %c0_133 = arith.constant 0 : index
    %c0_134 = arith.constant 0 : index
    %341 = memref.load %arg7[%c0_133, %c0_134] : memref<1x1xf32, #tpu.memory_space<smem>>
    memref.store %340, %arg7[%c0_133, %c0_134] : memref<1x1xf32, #tpu.memory_space<smem>>
    return
  }
}

</mosaic_0001>

<llo_original>
// kernel: svi_forward.1
$region0: #{svi_forward.1}
  #allocation0 [shape = 'u32[]', space=smem, size = 0x4, offset = 0x4, fixed_abs, tag = 'smem constant byte address 0x4 - core index']
  #allocation1 [shape = 'u32[144,128]{1,0:T(1,128)}', space=vmem, size = 0x12000, scoped, tag = 'internal scratch']
  %s0 = inlined_call_operand.vmem [shape: f32[8,32], index: 0, kind: input, shape index: {}]
  %s1 = inlined_call_operand.vmem [shape: f32[32,16], index: 1, kind: input, shape index: {}]
  %s2 = inlined_call_operand.vmem [shape: f32[112,32], index: 2, kind: input, shape index: {}]
  %s3 = inlined_call_operand.vmem [shape: f32[8,32], index: 3, kind: input, shape index: {}]
  %s4 = inlined_call_operand.vmem [shape: f32[32,4], index: 4, kind: input, shape index: {}]
  %s5 = inlined_call_operand.vmem [shape: f32[5,32], index: 5, kind: input, shape index: {}]
  %s6 = inlined_call_operand.hbm [shape: f32[32,32], index: 6, kind: output, shape index: {0}]
  %s7 = inlined_call_operand.hbm [shape: f32[1,1], index: 7, kind: output, shape index: {1}]
  %8 = xla_tuple %s6, %s7
  %s9 = sld [smem:[#allocation0]]
  $region42: #{svi_forward.1} parent=0
    _
  %s11 = ssub.s32 1, %s9
  %s12 = scalar_select 0, %s11, %s9
  $region1: #{svi_forward.1} parent=0
    #allocation2 [shape = 'u8[16384]{0}', space=vmem, size = 0x4000, scoped, tag = 'output window, operand 0, single buffered']
    #allocation3 [shape = 's32[1]{0}', space=sflag, size = 0x4, scoped, tag = 'scoped memory for svi_forward.1']
    #allocation4 [shape = 's32[1]{0}', space=sflag, size = 0x4, scoped, tag = 'scoped memory for svi_forward.1']
    #allocation5 [shape = 'u8[512]{0}', space=smem, size = 0x200, scoped, tag = 'output window, operand 1, single buffered']
    %13 = vsyncpa [#allocation3], 0
    %14 = vsyncpa [#allocation4], 0
    // Predicated region
    $region2: #{svi_forward.1} parent=1 // pred_check
      _
    $region3: #{svi_forward.1} parent=1 // pred_check_branch
      %16 = sbr.rel (0) target = $region5
    $region4: #{svi_forward.1} parent=1 // pred_region
      _
    $region5: #{svi_forward.1} parent=1 // pred_fallthru
      _
    // Predicated region
    $region6: #{svi_forward.1} parent=1 // pred_check
      _
    $region7: #{svi_forward.1} parent=1 // pred_check_branch
      %18 = sbr.rel (0) target = $region9
    $region8: #{svi_forward.1} parent=1 // pred_region
      _
    $region9: #{svi_forward.1} parent=1 // pred_fallthru
      _
    // Predicated region
    $region10: #{svi_forward.1} parent=1 // pred_check
      _
    $region11: #{svi_forward.1} parent=1 // pred_check_branch
      %20 = sbr.rel (0) target = $region13
    $region12: #{svi_forward.1} parent=1 // pred_region
      _
    $region13: #{svi_forward.1} parent=1 // pred_fallthru
      _
    // Predicated region
    $region14: #{svi_forward.1} parent=1 // pred_check
      _
    $region15: #{svi_forward.1} parent=1 // pred_check_branch
      %22 = sbr.rel (0) target = $region17
    $region16: #{svi_forward.1} parent=1 // pred_region
      _
    $region17: #{svi_forward.1} parent=1 // pred_fallthru
      _
    // Predicated region
    $region18: #{svi_forward.1} parent=1 // pred_check
      _
    $region19: #{svi_forward.1} parent=1 // pred_check_branch
      %24 = sbr.rel (0) target = $region21
    $region20: #{svi_forward.1} parent=1 // pred_region
      _
    $region21: #{svi_forward.1} parent=1 // pred_fallthru
      _
    // Predicated region
    $region22: #{svi_forward.1} parent=1 // pred_check
      _
    $region23: #{svi_forward.1} parent=1 // pred_check_branch
      %26 = sbr.rel (0) target = $region25
    $region24: #{svi_forward.1} parent=1 // pred_region
      _
    $region25: #{svi_forward.1} parent=1 // pred_fallthru
      _
    %v27 = vld [vmem:[%s0] sm:$0xff]
    %v28 = vsub.f32 1.0, %v27
    %v29 = vld [vmem:[%s2] sm:$0xff]
    %v30 = vld [vmem:[%s2 + $0x8] sm:$0xff]
    %v31 = vld [vmem:[%s2 + $0x10] sm:$0xff]
    %v32 = vld [vmem:[%s2 + $0x18] sm:$0xff]
    %v33 = vld [vmem:[%s2 + $0x20] sm:$0xff]
    %v34 = vld [vmem:[%s2 + $0x28] sm:$0xff]
    %v35 = vld [vmem:[%s2 + $0x30] sm:$0xff]
    %v36 = vld [vmem:[%s2 + $0x38] sm:$0xff]
    %v37 = vld [vmem:[%s2 + $0x40] sm:$0xff]
    %v38 = vld [vmem:[%s2 + $0x48] sm:$0xff]
    %v39 = vld [vmem:[%s2 + $0x50] sm:$0xff]
    %v40 = vld [vmem:[%s2 + $0x58] sm:$0xff]
    %v41 = vld [vmem:[%s2 + $0x60] sm:$0xff]
    %v42 = vld [vmem:[%s2 + $0x68] sm:$0xff]
    %v43 = vld [vmem:[%s5] sm:$0x1]
    %v44 = vld [vmem:[%s5 + $0x1] sm:$0x1]
    %v45 = vld [vmem:[%s5 + $0x2] sm:$0x1]
    %v46 = vld [vmem:[%s5 + $0x3] sm:$0x1]
    %v47 = vld [vmem:[%s5 + $0x4] sm:$0x1]
    %v48 = vld [vmem:[%s4] sm:$0xff]
    %v49 = vld [vmem:[%s4 + $0x8] sm:$0xff]
    %v50 = vld [vmem:[%s4 + $0x10] sm:$0xff]
    %v51 = vld [vmem:[%s4 + $0x18] sm:$0xff]
    %v52 = vlaneseq
    %v53 = vshrl.u32 %v52, 7
    %v54 = vsub.s32 0, %v53
    %v55 = vrot.slane %v47, %v54
    %vm56 = vcmask 261120
    %v58 = vsel %vm56, %v27, 0
    %60 = vmatprep.subr.mxu0 0.0
    %61 = vmatpush1.msra.mxu0 0.0
    %62 = vmatprep.subr.mxu0 0.0
    %63 = vmatpush1.msra.mxu0 0.0
    %64 = vmatprep.subr.mxu0 0.0
    %65 = vmatpush1.msra.mxu0 0.0
    %66 = vmatprep.subr.mxu0 0.0
    %67 = vmatpush1.msra.mxu0 0.0
    %68 = vmatprep.subr.mxu0 0.0
    %69 = vmatpush1.msra.mxu0 0.0
    %70 = vmatprep.subr.mxu0 0.0
    %71 = vmatpush1.msra.mxu0 0.0
    %72 = vmatprep.subr.mxu0 0.0
    %73 = vmatpush1.msra.mxu0 0.0
    %74 = vmatprep.subr.mxu0 0.0
    %75 = vmatpush1.msra.mxu0 0.0
    %76 = vmatprep.subr.mxu0 0.0
    %77 = vmatpush1.msra.mxu0 0.0
    %78 = vmatprep.subr.mxu0 0.0
    %79 = vmatpush1.msra.mxu0 0.0
    %80 = vmatprep.subr.mxu0 0.0
    %81 = vmatpush1.msra.mxu0 0.0
    %82 = vmatprep.subr.mxu0 0.0
    %83 = vmatpush1.msra.mxu0 0.0
    %84 = vmatprep.subr.mxu0 0.0
    %85 = vmatpush1.msra.mxu0 %v51
    %86 = vmatprep.subr.mxu0 0.0
    %87 = vmatpush1.msra.mxu0 %v50
    %88 = vmatprep.subr.mxu0 0.0
    %89 = vmatpush1.msra.mxu0 %v49
    %90 = vmatprep.subr.mxu0 0.0
    %91 = vmatpush1.msra.mxu0 %v48
    %92 = vmatprep.subr.mxu0 0.0
    %93 = vmatpush2.msra.mxu0 0.0
    %94 = vmatprep.subr.mxu0 0.0
    %95 = vmatpush2.msra.mxu0 0.0
    %96 = vmatprep.subr.mxu0 0.0
    %97 = vmatpush2.msra.mxu0 0.0
    %98 = vmatprep.subr.mxu0 0.0
    %99 = vmatpush2.msra.mxu0 0.0
    %100 = vmatprep.subr.mxu0 0.0
    %101 = vmatpush2.msra.mxu0 0.0
    %102 = vmatprep.subr.mxu0 0.0
    %103 = vmatpush2.msra.mxu0 0.0
    %104 = vmatprep.subr.mxu0 0.0
    %105 = vmatpush2.msra.mxu0 0.0
    %106 = vmatprep.subr.mxu0 0.0
    %107 = vmatpush2.msra.mxu0 0.0
    %108 = vmatprep.subr.mxu0 0.0
    %109 = vmatpush2.msra.mxu0 0.0
    %110 = vmatprep.subr.mxu0 0.0
    %111 = vmatpush2.msra.mxu0 0.0
    %112 = vmatprep.subr.mxu0 0.0
    %113 = vmatpush2.msra.mxu0 0.0
    %114 = vmatprep.subr.mxu0 0.0
    %115 = vmatpush2.msra.mxu0 0.0
    %116 = vmatprep.subr.mxu0 0.0
    %117 = vmatpush2.msra.mxu0 0.0
    %118 = vmatprep.subr.mxu0 0.0
    %119 = vmatpush2.msra.mxu0 0.0
    %120 = vmatprep.subr.mxu0 0.0
    %121 = vmatpush2.msra.mxu0 0.0
    %122 = vmatprep.subr.mxu0 0.0
    %123 = vmatpush2.msra.mxu0 0.0
    %124 = vmatprep.mubr.f32.mxu0 0.0
    %125 = vmatmul.mubr.f32.gmra.mxu0 %v58
    %v126 = vpop.f32.mrf.mxu0
    %v127 = vadd.f32 %v55, %v126
    %v128 = vpop.f32.mrf.mxu0
    %129 = vdwg.mxu0
    %vm130 = vcmask 31744
    %v131 = vsel %vm130, %v127, -inf
    %132 = vmax.xlane.f32.xlu0 %v131
    %v133 = vpop.xlane.xlu0 %132
    %v134 = vsub.f32 %v127, %v133
    %v135 = vmul.f32 %v134, 1.442695
    %v136 = vpow.pop %v135
    %v137 = vsel %vm130, %v136, 0.0
    %138 = vadd.xlane.f32.xlu0 %v137
    %v139 = vpop.xlane.xlu0 %138
    %v140 = vlog2.pop %v139
    %v141 = vmul.f32 %v140, 0.6931472
    %v142 = vsub.f32 %v134, %v141
    %v143 = vmul.f32 %v142, 1.442695
    %v144 = vpow.pop %v143
    %v145 = vmul.f32 %v144, %v142
    %v146 = vsel %vm130, %v145, 0.0
    %147 = vadd.xlane.f32.xlu0 %v146
    %v148 = vpop.xlane.xlu0 %147
    %v149 = vsub.f32 0.0, %v148
    %v150 = vlaneseq
    %v151 = vshrl.u32 %v150, 7
    %v152 = vsub.s32 0, %v151
    %v153 = vrot.slane %v43, %v152
    %154 = vmatprep.subr.mxu0 0.0
    %155 = vmatpush1.msra.mxu0 0.0
    %156 = vmatprep.subr.mxu0 0.0
    %157 = vmatpush1.msra.mxu0 0.0
    %158 = vmatprep.subr.mxu0 0.0
    %159 = vmatpush1.msra.mxu0 0.0
    %160 = vmatprep.subr.mxu0 0.0
    %161 = vmatpush1.msra.mxu0 0.0
    %162 = vmatprep.subr.mxu0 0.0
    %163 = vmatpush1.msra.mxu0 0.0
    %164 = vmatprep.subr.mxu0 0.0
    %165 = vmatpush1.msra.mxu0 0.0
    %166 = vmatprep.subr.mxu0 0.0
    %167 = vmatpush1.msra.mxu0 0.0
    %168 = vmatprep.subr.mxu0 0.0
    %169 = vmatpush1.msra.mxu0 0.0
    %170 = vmatprep.subr.mxu0 0.0
    %171 = vmatpush1.msra.mxu0 0.0
    %172 = vmatprep.subr.mxu0 0.0
    %173 = vmatpush1.msra.mxu0 0.0
    %174 = vmatprep.subr.mxu0 0.0
    %175 = vmatpush1.msra.mxu0 0.0
    %176 = vmatprep.subr.mxu0 0.0
    %177 = vmatpush1.msra.mxu0 0.0
    %178 = vmatprep.subr.mxu0 0.0
    %179 = vmatpush1.msra.mxu0 %v32
    %180 = vmatprep.subr.mxu0 0.0
    %181 = vmatpush1.msra.mxu0 %v31
    %182 = vmatprep.subr.mxu0 0.0
    %183 = vmatpush1.msra.mxu0 %v30
    %184 = vmatprep.subr.mxu0 0.0
    %185 = vmatpush1.msra.mxu0 %v29
    %186 = vmatprep.subr.mxu0 0.0
    %187 = vmatpush2.msra.mxu0 0.0
    %188 = vmatprep.subr.mxu0 0.0
    %189 = vmatpush2.msra.mxu0 0.0
    %190 = vmatprep.subr.mxu0 0.0
    %191 = vmatpush2.msra.mxu0 0.0
    %192 = vmatprep.subr.mxu0 0.0
    %193 = vmatpush2.msra.mxu0 0.0
    %194 = vmatprep.subr.mxu0 0.0
    %195 = vmatpush2.msra.mxu0 0.0
    %196 = vmatprep.subr.mxu0 0.0
    %197 = vmatpush2.msra.mxu0 0.0
    %198 = vmatprep.subr.mxu0 0.0
    %199 = vmatpush2.msra.mxu0 0.0
    %200 = vmatprep.subr.mxu0 0.0
    %201 = vmatpush2.msra.mxu0 0.0
    %202 = vmatprep.subr.mxu0 0.0
    %203 = vmatpush2.msra.mxu0 0.0
    %204 = vmatprep.subr.mxu0 0.0
    %205 = vmatpush2.msra.mxu0 0.0
    %206 = vmatprep.subr.mxu0 0.0
    %207 = vmatpush2.msra.mxu0 0.0
    %208 = vmatprep.subr.mxu0 0.0
    %209 = vmatpush2.msra.mxu0 0.0
    %210 = vmatprep.subr.mxu0 0.0
    %211 = vmatpush2.msra.mxu0 0.0
    %212 = vmatprep.subr.mxu0 0.0
    %213 = vmatpush2.msra.mxu0 0.0
    %214 = vmatprep.subr.mxu0 0.0
    %215 = vmatpush2.msra.mxu0 0.0
    %216 = vmatprep.subr.mxu0 0.0
    %217 = vmatpush2.msra.mxu0 0.0
    %218 = vmatprep.mubr.f32.mxu0 0.0
    %219 = vmatmul.mubr.f32.gmra.mxu0 %v58
    %v220 = vpop.f32.mrf.mxu0
    %v221 = vadd.f32 %v153, %v220
    %v222 = vpop.f32.mrf.mxu0
    %223 = vdwg.mxu0
    %v224 = vld [vmem:[%s3] sm:$0x1]
    %v225 = vld [vmem:[%s3 + $0x4] sm:$0x1]
    %v226 = vlaneseq
    %v227 = vshrl.u32 %v226, 7
    %v228 = vsub.s32 0, %v227
    %v229 = vrot.slane %v224, %v228
    %v230 = vadd.f32 %v221, %v229
    %v231 = vmax.f32 %v230, 0.0
    %v232 = vlaneseq
    %v233 = vshrl.u32 %v232, 7
    %v234 = vsub.s32 0, %v233
    %v235 = vrot.slane %v44, %v234
    %v237 = vsel %vm56, %v231, 0
    %239 = vmatprep.subr.mxu0 0.0
    %240 = vmatpush1.msra.mxu0 0.0
    %241 = vmatprep.subr.mxu0 0.0
    %242 = vmatpush1.msra.mxu0 0.0
    %243 = vmatprep.subr.mxu0 0.0
    %244 = vmatpush1.msra.mxu0 0.0
    %245 = vmatprep.subr.mxu0 0.0
    %246 = vmatpush1.msra.mxu0 0.0
    %247 = vmatprep.subr.mxu0 0.0
    %248 = vmatpush1.msra.mxu0 0.0
    %249 = vmatprep.subr.mxu0 0.0
    %250 = vmatpush1.msra.mxu0 0.0
    %251 = vmatprep.subr.mxu0 0.0
    %252 = vmatpush1.msra.mxu0 0.0
    %253 = vmatprep.subr.mxu0 0.0
    %254 = vmatpush1.msra.mxu0 0.0
    %255 = vmatprep.subr.mxu0 0.0
    %256 = vmatpush1.msra.mxu0 0.0
    %257 = vmatprep.subr.mxu0 0.0
    %258 = vmatpush1.msra.mxu0 0.0
    %259 = vmatprep.subr.mxu0 0.0
    %260 = vmatpush1.msra.mxu0 0.0
    %261 = vmatprep.subr.mxu0 0.0
    %262 = vmatpush1.msra.mxu0 0.0
    %263 = vmatprep.subr.mxu0 0.0
    %264 = vmatpush1.msra.mxu0 %v36
    %265 = vmatprep.subr.mxu0 0.0
    %266 = vmatpush1.msra.mxu0 %v35
    %267 = vmatprep.subr.mxu0 0.0
    %268 = vmatpush1.msra.mxu0 %v34
    %269 = vmatprep.subr.mxu0 0.0
    %270 = vmatpush1.msra.mxu0 %v33
    %271 = vmatprep.subr.mxu0 0.0
    %272 = vmatpush2.msra.mxu0 0.0
    %273 = vmatprep.subr.mxu0 0.0
    %274 = vmatpush2.msra.mxu0 0.0
    %275 = vmatprep.subr.mxu0 0.0
    %276 = vmatpush2.msra.mxu0 0.0
    %277 = vmatprep.subr.mxu0 0.0
    %278 = vmatpush2.msra.mxu0 0.0
    %279 = vmatprep.subr.mxu0 0.0
    %280 = vmatpush2.msra.mxu0 0.0
    %281 = vmatprep.subr.mxu0 0.0
    %282 = vmatpush2.msra.mxu0 0.0
    %283 = vmatprep.subr.mxu0 0.0
    %284 = vmatpush2.msra.mxu0 0.0
    %285 = vmatprep.subr.mxu0 0.0
    %286 = vmatpush2.msra.mxu0 0.0
    %287 = vmatprep.subr.mxu0 0.0
    %288 = vmatpush2.msra.mxu0 0.0
    %289 = vmatprep.subr.mxu0 0.0
    %290 = vmatpush2.msra.mxu0 0.0
    %291 = vmatprep.subr.mxu0 0.0
    %292 = vmatpush2.msra.mxu0 0.0
    %293 = vmatprep.subr.mxu0 0.0
    %294 = vmatpush2.msra.mxu0 0.0
    %295 = vmatprep.subr.mxu0 0.0
    %296 = vmatpush2.msra.mxu0 0.0
    %297 = vmatprep.subr.mxu0 0.0
    %298 = vmatpush2.msra.mxu0 0.0
    %299 = vmatprep.subr.mxu0 0.0
    %300 = vmatpush2.msra.mxu0 0.0
    %301 = vmatprep.subr.mxu0 0.0
    %302 = vmatpush2.msra.mxu0 0.0
    %303 = vmatprep.mubr.f32.mxu0 0.0
    %304 = vmatmul.mubr.f32.gmra.mxu0 %v237
    %v305 = vpop.f32.mrf.mxu0
    %v306 = vadd.f32 %v235, %v305
    %v307 = vpop.f32.mrf.mxu0
    %308 = vdwg.mxu0
    %v309 = vld [vmem:[%s1] sm:$0xff]
    %v310 = vmul.f32 %v306, 0.5
    %v311 = vmul.f32 %v310, 1.442695
    %v312 = vpow.pop %v311
    %314 = vrot.lane.b32.xlu0 %v312, 112
    %v315 = vpop.permute.xlu0 %314
    %v317 = vmul.f32 %v309, %v315
    %v318 = vadd.f32 %v306, %v317
    %v319 = vadd.f32 %v306, 1.0
    %v320 = vmul.f32 %v306, %v306
    %322 = vrot.lane.b32.xlu0 %v320, 16
    %v323 = vpop.permute.xlu0 %322
    %v325 = vsub.f32 %v319, %v323
    %v326 = vmul.f32 %v306, 1.442695
    %v327 = vpow.pop %v326
    %v328 = vsub.f32 %v325, %v327
    %330 = vrot.lane.b32.xlu0 %v328, 112
    %v331 = vpop.permute.xlu0 %330
    %vm333 = vcmask 130048
    %v334 = vsel %vm333, %v331, 0.0
    %335 = vadd.xlane.f32.xlu0 %v334
    %v336 = vpop.xlane.xlu0 %335
    %v337 = vmul.f32 %v336, -0.5
    %v338 = vlaneseq
    %v339 = vshrl.u32 %v338, 7
    %v340 = vsub.s32 0, %v339
    %v341 = vrot.slane %v225, %v340
    %v343 = vsel %vm333, %v318, 0
    %345 = vmatprep.subr.mxu0 0.0
    %346 = vmatpush1.msra.mxu0 0.0
    %347 = vmatprep.subr.mxu0 0.0
    %348 = vmatpush1.msra.mxu0 0.0
    %349 = vmatprep.subr.mxu0 0.0
    %350 = vmatpush1.msra.mxu0 0.0
    %351 = vmatprep.subr.mxu0 0.0
    %352 = vmatpush1.msra.mxu0 0.0
    %353 = vmatprep.subr.mxu0 0.0
    %354 = vmatpush1.msra.mxu0 0.0
    %355 = vmatprep.subr.mxu0 0.0
    %356 = vmatpush1.msra.mxu0 0.0
    %357 = vmatprep.subr.mxu0 0.0
    %358 = vmatpush1.msra.mxu0 0.0
    %359 = vmatprep.subr.mxu0 0.0
    %360 = vmatpush1.msra.mxu0 0.0
    %361 = vmatprep.subr.mxu0 0.0
    %362 = vmatpush1.msra.mxu0 0.0
    %363 = vmatprep.subr.mxu0 0.0
    %364 = vmatpush1.msra.mxu0 0.0
    %365 = vmatprep.subr.mxu0 0.0
    %366 = vmatpush1.msra.mxu0 0.0
    %367 = vmatprep.subr.mxu0 0.0
    %368 = vmatpush1.msra.mxu0 0.0
    %369 = vmatprep.subr.mxu0 0.0
    %370 = vmatpush1.msra.mxu0 0.0
    %371 = vmatprep.subr.mxu0 0.0
    %372 = vmatpush1.msra.mxu0 0.0
    %373 = vmatprep.subr.mxu0 0.0
    %374 = vmatpush1.msra.mxu0 %v42
    %375 = vmatprep.subr.mxu0 0.0
    %376 = vmatpush1.msra.mxu0 %v41
    %377 = vmatprep.subr.mxu0 0.0
    %378 = vmatpush2.msra.mxu0 0.0
    %379 = vmatprep.subr.mxu0 0.0
    %380 = vmatpush2.msra.mxu0 0.0
    %381 = vmatprep.subr.mxu0 0.0
    %382 = vmatpush2.msra.mxu0 0.0
    %383 = vmatprep.subr.mxu0 0.0
    %384 = vmatpush2.msra.mxu0 0.0
    %385 = vmatprep.subr.mxu0 0.0
    %386 = vmatpush2.msra.mxu0 0.0
    %387 = vmatprep.subr.mxu0 0.0
    %388 = vmatpush2.msra.mxu0 0.0
    %389 = vmatprep.subr.mxu0 0.0
    %390 = vmatpush2.msra.mxu0 0.0
    %391 = vmatprep.subr.mxu0 0.0
    %392 = vmatpush2.msra.mxu0 0.0
    %393 = vmatprep.subr.mxu0 0.0
    %394 = vmatpush2.msra.mxu0 0.0
    %395 = vmatprep.subr.mxu0 0.0
    %396 = vmatpush2.msra.mxu0 0.0
    %397 = vmatprep.subr.mxu0 0.0
    %398 = vmatpush2.msra.mxu0 0.0
    %399 = vmatprep.subr.mxu0 0.0
    %400 = vmatpush2.msra.mxu0 0.0
    %401 = vmatprep.subr.mxu0 0.0
    %402 = vmatpush2.msra.mxu0 0.0
    %403 = vmatprep.subr.mxu0 0.0
    %404 = vmatpush2.msra.mxu0 0.0
    %405 = vmatprep.subr.mxu0 0.0
    %406 = vmatpush2.msra.mxu0 0.0
    %407 = vmatprep.subr.mxu0 0.0
    %408 = vmatpush2.msra.mxu0 0.0
    %409 = vmatprep.mubr.f32.mxu0 0.0
    %410 = vmatmul.mubr.f32.gmra.mxu0 %v343
    %v411 = vpop.f32.mrf.mxu0
    %v412 = vadd.f32 %v341, %v411
    %v413 = vpop.f32.mrf.mxu0
    %414 = vdwg.mxu0
    %v415 = vlaneseq
    %v416 = vshrl.u32 %v415, 7
    %v417 = vsub.s32 0, %v416
    %v418 = vrot.slane %v45, %v417
    %v419 = vadd.f32 %v412, %v418
    %v420 = vmax.f32 %v419, 0.0
    %v421 = vlaneseq
    %v422 = vshrl.u32 %v421, 7
    %v423 = vsub.s32 0, %v422
    %v424 = vrot.slane %v46, %v423
    %v426 = vsel %vm56, %v420, 0
    %428 = vmatprep.subr.mxu0 0.0
    %429 = vmatpush1.msra.mxu0 0.0
    %430 = vmatprep.subr.mxu0 0.0
    %431 = vmatpush1.msra.mxu0 0.0
    %432 = vmatprep.subr.mxu0 0.0
    %433 = vmatpush1.msra.mxu0 0.0
    %434 = vmatprep.subr.mxu0 0.0
    %435 = vmatpush1.msra.mxu0 0.0
    %436 = vmatprep.subr.mxu0 0.0
    %437 = vmatpush1.msra.mxu0 0.0
    %438 = vmatprep.subr.mxu0 0.0
    %439 = vmatpush1.msra.mxu0 0.0
    %440 = vmatprep.subr.mxu0 0.0
    %441 = vmatpush1.msra.mxu0 0.0
    %442 = vmatprep.subr.mxu0 0.0
    %443 = vmatpush1.msra.mxu0 0.0
    %444 = vmatprep.subr.mxu0 0.0
    %445 = vmatpush1.msra.mxu0 0.0
    %446 = vmatprep.subr.mxu0 0.0
    %447 = vmatpush1.msra.mxu0 0.0
    %448 = vmatprep.subr.mxu0 0.0
    %449 = vmatpush1.msra.mxu0 0.0
    %450 = vmatprep.subr.mxu0 0.0
    %451 = vmatpush1.msra.mxu0 0.0
    %452 = vmatprep.subr.mxu0 0.0
    %453 = vmatpush1.msra.mxu0 %v40
    %454 = vmatprep.subr.mxu0 0.0
    %455 = vmatpush1.msra.mxu0 %v39
    %456 = vmatprep.subr.mxu0 0.0
    %457 = vmatpush1.msra.mxu0 %v38
    %458 = vmatprep.subr.mxu0 0.0
    %459 = vmatpush1.msra.mxu0 %v37
    %460 = vmatprep.subr.mxu0 0.0
    %461 = vmatpush2.msra.mxu0 0.0
    %462 = vmatprep.subr.mxu0 0.0
    %463 = vmatpush2.msra.mxu0 0.0
    %464 = vmatprep.subr.mxu0 0.0
    %465 = vmatpush2.msra.mxu0 0.0
    %466 = vmatprep.subr.mxu0 0.0
    %467 = vmatpush2.msra.mxu0 0.0
    %468 = vmatprep.subr.mxu0 0.0
    %469 = vmatpush2.msra.mxu0 0.0
    %470 = vmatprep.subr.mxu0 0.0
    %471 = vmatpush2.msra.mxu0 0.0
    %472 = vmatprep.subr.mxu0 0.0
    %473 = vmatpush2.msra.mxu0 0.0
    %474 = vmatprep.subr.mxu0 0.0
    %475 = vmatpush2.msra.mxu0 0.0
    %476 = vmatprep.subr.mxu0 0.0
    %477 = vmatpush2.msra.mxu0 0.0
    %478 = vmatprep.subr.mxu0 0.0
    %479 = vmatpush2.msra.mxu0 0.0
    %480 = vmatprep.subr.mxu0 0.0
    %481 = vmatpush2.msra.mxu0 0.0
    %482 = vmatprep.subr.mxu0 0.0
    %483 = vmatpush2.msra.mxu0 0.0
    %484 = vmatprep.subr.mxu0 0.0
    %485 = vmatpush2.msra.mxu0 0.0
    %486 = vmatprep.subr.mxu0 0.0
    %487 = vmatpush2.msra.mxu0 0.0
    %488 = vmatprep.subr.mxu0 0.0
    %489 = vmatpush2.msra.mxu0 0.0
    %490 = vmatprep.subr.mxu0 0.0
    %491 = vmatpush2.msra.mxu0 0.0
    %492 = vmatprep.mubr.f32.mxu0 0.0
    %493 = vmatmul.mubr.f32.gmra.mxu0 %v426
    %v494 = vpop.f32.mrf.mxu0
    %v495 = vadd.f32 %v424, %v494
    %v496 = vpop.f32.mrf.mxu0
    %497 = vdwg.mxu0
    %v498 = vsub.f32 0.0, %v495
    %v499 = vmax.f32 %v498, 0.0
    %v500 = vand.u32 2147483647, %v495
    %v501 = vsub.f32 0.0, %v500
    %v502 = vmul.f32 %v501, 1.442695
    %v503 = vpow.pop %v502
    %v504 = vadd.f32 %v503, 1.0
    %v505 = vlog2.pop %v504
    %v506 = vmul.f32 %v505, 0.6931472
    %v507 = vadd.f32 %v499, %v506
    %v508 = vsub.f32 0.0, %v507
    %v509 = vmul.f32 %v508, 1.442695
    %v510 = vpow.pop %v509
    %511 = vst.msk [vmem:[#allocation2] sm:$0xff] %vm56, %v510
    %v512 = vmax.f32 %v508, -100.0
    %v513 = vadd.f32 %v495, %v507
    %v514 = vsub.f32 0.0, %v513
    %v515 = vmax.f32 %v514, -100.0
    %v516 = vmul.f32 %v27, %v512
    %v517 = vmul.f32 %v28, %v515
    %v518 = vadd.f32 %v516, %v517
    %v519 = vsub.f32 0.0, %v518
    %v520 = vsel %vm56, %v519, 0.0
    %521 = vadd.xlane.f32.xlu0 %v520
    %v522 = vpop.xlane.xlu0 %521
    %v523 = vadd.f32 %v522, 0.0
    %v524 = vmul.f32 %v144, %v337
    %v525 = vadd.f32 %v524, 0.0
    %v526 = vld [vmem:[%s3 + $0x1] sm:$0x1]
    %v527 = vld [vmem:[%s3 + $0x5] sm:$0x1]
    %v528 = vlaneseq
    %v529 = vshrl.u32 %v528, 7
    %v530 = vsub.s32 0, %v529
    %v531 = vrot.slane %v526, %v530
    %v532 = vadd.f32 %v221, %v531
    %v533 = vmax.f32 %v532, 0.0
    %v535 = vsel %vm56, %v533, 0
    %537 = vmatprep.subr.mxu0 0.0
    %538 = vmatpush1.msra.mxu0 0.0
    %539 = vmatprep.subr.mxu0 0.0
    %540 = vmatpush1.msra.mxu0 0.0
    %541 = vmatprep.subr.mxu0 0.0
    %542 = vmatpush1.msra.mxu0 0.0
    %543 = vmatprep.subr.mxu0 0.0
    %544 = vmatpush1.msra.mxu0 0.0
    %545 = vmatprep.subr.mxu0 0.0
    %546 = vmatpush1.msra.mxu0 0.0
    %547 = vmatprep.subr.mxu0 0.0
    %548 = vmatpush1.msra.mxu0 0.0
    %549 = vmatprep.subr.mxu0 0.0
    %550 = vmatpush1.msra.mxu0 0.0
    %551 = vmatprep.subr.mxu0 0.0
    %552 = vmatpush1.msra.mxu0 0.0
    %553 = vmatprep.subr.mxu0 0.0
    %554 = vmatpush1.msra.mxu0 0.0
    %555 = vmatprep.subr.mxu0 0.0
    %556 = vmatpush1.msra.mxu0 0.0
    %557 = vmatprep.subr.mxu0 0.0
    %558 = vmatpush1.msra.mxu0 0.0
    %559 = vmatprep.subr.mxu0 0.0
    %560 = vmatpush1.msra.mxu0 0.0
    %561 = vmatprep.subr.mxu0 0.0
    %562 = vmatpush1.msra.mxu0 %v36
    %563 = vmatprep.subr.mxu0 0.0
    %564 = vmatpush1.msra.mxu0 %v35
    %565 = vmatprep.subr.mxu0 0.0
    %566 = vmatpush1.msra.mxu0 %v34
    %567 = vmatprep.subr.mxu0 0.0
    %568 = vmatpush1.msra.mxu0 %v33
    %569 = vmatprep.subr.mxu0 0.0
    %570 = vmatpush2.msra.mxu0 0.0
    %571 = vmatprep.subr.mxu0 0.0
    %572 = vmatpush2.msra.mxu0 0.0
    %573 = vmatprep.subr.mxu0 0.0
    %574 = vmatpush2.msra.mxu0 0.0
    %575 = vmatprep.subr.mxu0 0.0
    %576 = vmatpush2.msra.mxu0 0.0
    %577 = vmatprep.subr.mxu0 0.0
    %578 = vmatpush2.msra.mxu0 0.0
    %579 = vmatprep.subr.mxu0 0.0
    %580 = vmatpush2.msra.mxu0 0.0
    %581 = vmatprep.subr.mxu0 0.0
    %582 = vmatpush2.msra.mxu0 0.0
    %583 = vmatprep.subr.mxu0 0.0
    %584 = vmatpush2.msra.mxu0 0.0
    %585 = vmatprep.subr.mxu0 0.0
    %586 = vmatpush2.msra.mxu0 0.0
    %587 = vmatprep.subr.mxu0 0.0
    %588 = vmatpush2.msra.mxu0 0.0
    %589 = vmatprep.subr.mxu0 0.0
    %590 = vmatpush2.msra.mxu0 0.0
    %591 = vmatprep.subr.mxu0 0.0
    %592 = vmatpush2.msra.mxu0 0.0
    %593 = vmatprep.subr.mxu0 0.0
    %594 = vmatpush2.msra.mxu0 0.0
    %595 = vmatprep.subr.mxu0 0.0
    %596 = vmatpush2.msra.mxu0 0.0
    %597 = vmatprep.subr.mxu0 0.0
    %598 = vmatpush2.msra.mxu0 0.0
    %599 = vmatprep.subr.mxu0 0.0
    %600 = vmatpush2.msra.mxu0 0.0
    %601 = vmatprep.mubr.f32.mxu0 0.0
    %602 = vmatmul.mubr.f32.gmra.mxu0 %v535
    %v603 = vpop.f32.mrf.mxu0
    %v604 = vadd.f32 %v235, %v603
    %v605 = vpop.f32.mrf.mxu0
    %606 = vdwg.mxu0
    %v607 = vld [vmem:[%s1 + $0x8] sm:$0xff]
    %v608 = vmul.f32 %v604, 0.5
    %v609 = vmul.f32 %v608, 1.442695
    %v610 = vpow.pop %v609
    %612 = vrot.lane.b32.xlu0 %v610, 112
    %v613 = vpop.permute.xlu0 %612
    %v615 = vmul.f32 %v607, %v613
    %v616 = vadd.f32 %v604, %v615
    %v617 = vadd.f32 %v604, 1.0
    %v618 = vmul.f32 %v604, %v604
    %620 = vrot.lane.b32.xlu0 %v618, 16
    %v621 = vpop.permute.xlu0 %620
    %v623 = vsub.f32 %v617, %v621
    %v624 = vmul.f32 %v604, 1.442695
    %v625 = vpow.pop %v624
    %v626 = vsub.f32 %v623, %v625
    %628 = vrot.lane.b32.xlu0 %v626, 112
    %v629 = vpop.permute.xlu0 %628
    %v631 = vsel %vm333, %v629, 0.0
    %632 = vadd.xlane.f32.xlu0 %v631
    %v633 = vpop.xlane.xlu0 %632
    %v634 = vmul.f32 %v633, -0.5
    %v635 = vlaneseq
    %v636 = vshrl.u32 %v635, 7
    %v637 = vsub.s32 0, %v636
    %v638 = vrot.slane %v527, %v637
    %v640 = vsel %vm333, %v616, 0
    %642 = vmatprep.subr.mxu0 0.0
    %643 = vmatpush1.msra.mxu0 0.0
    %644 = vmatprep.subr.mxu0 0.0
    %645 = vmatpush1.msra.mxu0 0.0
    %646 = vmatprep.subr.mxu0 0.0
    %647 = vmatpush1.msra.mxu0 0.0
    %648 = vmatprep.subr.mxu0 0.0
    %649 = vmatpush1.msra.mxu0 0.0
    %650 = vmatprep.subr.mxu0 0.0
    %651 = vmatpush1.msra.mxu0 0.0
    %652 = vmatprep.subr.mxu0 0.0
    %653 = vmatpush1.msra.mxu0 0.0
    %654 = vmatprep.subr.mxu0 0.0
    %655 = vmatpush1.msra.mxu0 0.0
    %656 = vmatprep.subr.mxu0 0.0
    %657 = vmatpush1.msra.mxu0 0.0
    %658 = vmatprep.subr.mxu0 0.0
    %659 = vmatpush1.msra.mxu0 0.0
    %660 = vmatprep.subr.mxu0 0.0
    %661 = vmatpush1.msra.mxu0 0.0
    %662 = vmatprep.subr.mxu0 0.0
    %663 = vmatpush1.msra.mxu0 0.0
    %664 = vmatprep.subr.mxu0 0.0
    %665 = vmatpush1.msra.mxu0 0.0
    %666 = vmatprep.subr.mxu0 0.0
    %667 = vmatpush1.msra.mxu0 0.0
    %668 = vmatprep.subr.mxu0 0.0
    %669 = vmatpush1.msra.mxu0 0.0
    %670 = vmatprep.subr.mxu0 0.0
    %671 = vmatpush1.msra.mxu0 %v42
    %672 = vmatprep.subr.mxu0 0.0
    %673 = vmatpush1.msra.mxu0 %v41
    %674 = vmatprep.subr.mxu0 0.0
    %675 = vmatpush2.msra.mxu0 0.0
    %676 = vmatprep.subr.mxu0 0.0
    %677 = vmatpush2.msra.mxu0 0.0
    %678 = vmatprep.subr.mxu0 0.0
    %679 = vmatpush2.msra.mxu0 0.0
    %680 = vmatprep.subr.mxu0 0.0
    %681 = vmatpush2.msra.mxu0 0.0
    %682 = vmatprep.subr.mxu0 0.0
    %683 = vmatpush2.msra.mxu0 0.0
    %684 = vmatprep.subr.mxu0 0.0
    %685 = vmatpush2.msra.mxu0 0.0
    %686 = vmatprep.subr.mxu0 0.0
    %687 = vmatpush2.msra.mxu0 0.0
    %688 = vmatprep.subr.mxu0 0.0
    %689 = vmatpush2.msra.mxu0 0.0
    %690 = vmatprep.subr.mxu0 0.0
    %691 = vmatpush2.msra.mxu0 0.0
    %692 = vmatprep.subr.mxu0 0.0
    %693 = vmatpush2.msra.mxu0 0.0
    %694 = vmatprep.subr.mxu0 0.0
    %695 = vmatpush2.msra.mxu0 0.0
    %696 = vmatprep.subr.mxu0 0.0
    %697 = vmatpush2.msra.mxu0 0.0
    %698 = vmatprep.subr.mxu0 0.0
    %699 = vmatpush2.msra.mxu0 0.0
    %700 = vmatprep.subr.mxu0 0.0
    %701 = vmatpush2.msra.mxu0 0.0
    %702 = vmatprep.subr.mxu0 0.0
    %703 = vmatpush2.msra.mxu0 0.0
    %704 = vmatprep.subr.mxu0 0.0
    %705 = vmatpush2.msra.mxu0 0.0
    %706 = vmatprep.mubr.f32.mxu0 0.0
    %707 = vmatmul.mubr.f32.gmra.mxu0 %v640
    %v708 = vpop.f32.mrf.mxu0
    %v709 = vadd.f32 %v638, %v708
    %v710 = vpop.f32.mrf.mxu0
    %711 = vdwg.mxu0
    %v712 = vadd.f32 %v709, %v418
    %v713 = vmax.f32 %v712, 0.0
    %v715 = vsel %vm56, %v713, 0
    %717 = vmatprep.subr.mxu0 0.0
    %718 = vmatpush1.msra.mxu0 0.0
    %719 = vmatprep.subr.mxu0 0.0
    %720 = vmatpush1.msra.mxu0 0.0
    %721 = vmatprep.subr.mxu0 0.0
    %722 = vmatpush1.msra.mxu0 0.0
    %723 = vmatprep.subr.mxu0 0.0
    %724 = vmatpush1.msra.mxu0 0.0
    %725 = vmatprep.subr.mxu0 0.0
    %726 = vmatpush1.msra.mxu0 0.0
    %727 = vmatprep.subr.mxu0 0.0
    %728 = vmatpush1.msra.mxu0 0.0
    %729 = vmatprep.subr.mxu0 0.0
    %730 = vmatpush1.msra.mxu0 0.0
    %731 = vmatprep.subr.mxu0 0.0
    %732 = vmatpush1.msra.mxu0 0.0
    %733 = vmatprep.subr.mxu0 0.0
    %734 = vmatpush1.msra.mxu0 0.0
    %735 = vmatprep.subr.mxu0 0.0
    %736 = vmatpush1.msra.mxu0 0.0
    %737 = vmatprep.subr.mxu0 0.0
    %738 = vmatpush1.msra.mxu0 0.0
    %739 = vmatprep.subr.mxu0 0.0
    %740 = vmatpush1.msra.mxu0 0.0
    %741 = vmatprep.subr.mxu0 0.0
    %742 = vmatpush1.msra.mxu0 %v40
    %743 = vmatprep.subr.mxu0 0.0
    %744 = vmatpush1.msra.mxu0 %v39
    %745 = vmatprep.subr.mxu0 0.0
    %746 = vmatpush1.msra.mxu0 %v38
    %747 = vmatprep.subr.mxu0 0.0
    %748 = vmatpush1.msra.mxu0 %v37
    %749 = vmatprep.subr.mxu0 0.0
    %750 = vmatpush2.msra.mxu0 0.0
    %751 = vmatprep.subr.mxu0 0.0
    %752 = vmatpush2.msra.mxu0 0.0
    %753 = vmatprep.subr.mxu0 0.0
    %754 = vmatpush2.msra.mxu0 0.0
    %755 = vmatprep.subr.mxu0 0.0
    %756 = vmatpush2.msra.mxu0 0.0
    %757 = vmatprep.subr.mxu0 0.0
    %758 = vmatpush2.msra.mxu0 0.0
    %759 = vmatprep.subr.mxu0 0.0
    %760 = vmatpush2.msra.mxu0 0.0
    %761 = vmatprep.subr.mxu0 0.0
    %762 = vmatpush2.msra.mxu0 0.0
    %763 = vmatprep.subr.mxu0 0.0
    %764 = vmatpush2.msra.mxu0 0.0
    %765 = vmatprep.subr.mxu0 0.0
    %766 = vmatpush2.msra.mxu0 0.0
    %767 = vmatprep.subr.mxu0 0.0
    %768 = vmatpush2.msra.mxu0 0.0
    %769 = vmatprep.subr.mxu0 0.0
    %770 = vmatpush2.msra.mxu0 0.0
    %771 = vmatprep.subr.mxu0 0.0
    %772 = vmatpush2.msra.mxu0 0.0
    %773 = vmatprep.subr.mxu0 0.0
    %774 = vmatpush2.msra.mxu0 0.0
    %775 = vmatprep.subr.mxu0 0.0
    %776 = vmatpush2.msra.mxu0 0.0
    %777 = vmatprep.subr.mxu0 0.0
    %778 = vmatpush2.msra.mxu0 0.0
    %779 = vmatprep.subr.mxu0 0.0
    %780 = vmatpush2.msra.mxu0 0.0
    %781 = vmatprep.mubr.f32.mxu0 0.0
    %782 = vmatmul.mubr.f32.gmra.mxu0 %v715
    %v783 = vpop.f32.mrf.mxu0
    %v784 = vadd.f32 %v424, %v783
    %v785 = vpop.f32.mrf.mxu0
    %786 = vdwg.mxu0
    %v787 = vsub.f32 0.0, %v784
    %v788 = vmax.f32 %v787, 0.0
    %v789 = vand.u32 2147483647, %v784
    %v790 = vsub.f32 0.0, %v789
    %v791 = vmul.f32 %v790, 1.442695
    %v792 = vpow.pop %v791
    %v793 = vadd.f32 %v792, 1.0
    %v794 = vlog2.pop %v793
    %v795 = vmul.f32 %v794, 0.6931472
    %v796 = vadd.f32 %v788, %v795
    %v797 = vsub.f32 0.0, %v796
    %v798 = vmul.f32 %v797, 1.442695
    %v799 = vpow.pop %v798
    %800 = vst.msk [vmem:[#allocation2 + $0x8] sm:$0xff] %vm56, %v799
    %v801 = vmax.f32 %v797, -100.0
    %v802 = vadd.f32 %v784, %v796
    %v803 = vsub.f32 0.0, %v802
    %v804 = vmax.f32 %v803, -100.0
    %v805 = vmul.f32 %v27, %v801
    %v806 = vmul.f32 %v28, %v804
    %v807 = vadd.f32 %v805, %v806
    %v808 = vsub.f32 0.0, %v807
    %v809 = vsel %vm56, %v808, 0.0
    %810 = vadd.xlane.f32.xlu0 %v809
    %v811 = vpop.xlane.xlu0 %810
    %v812 = vadd.f32 %v523, %v811
    %v813 = vmul.f32 %v144, %v634
    %815 = vrot.lane.b32.xlu0 %v813, 127
    %v816 = vpop.permute.xlu0 %815
    %v818 = vadd.f32 %v525, %v816
    %v819 = vld [vmem:[%s3 + $0x2] sm:$0x1]
    %v820 = vld [vmem:[%s3 + $0x6] sm:$0x1]
    %v821 = vlaneseq
    %v822 = vshrl.u32 %v821, 7
    %v823 = vsub.s32 0, %v822
    %v824 = vrot.slane %v819, %v823
    %v825 = vadd.f32 %v221, %v824
    %v826 = vmax.f32 %v825, 0.0
    %v828 = vsel %vm56, %v826, 0
    %830 = vmatprep.subr.mxu0 0.0
    %831 = vmatpush1.msra.mxu0 0.0
    %832 = vmatprep.subr.mxu0 0.0
    %833 = vmatpush1.msra.mxu0 0.0
    %834 = vmatprep.subr.mxu0 0.0
    %835 = vmatpush1.msra.mxu0 0.0
    %836 = vmatprep.subr.mxu0 0.0
    %837 = vmatpush1.msra.mxu0 0.0
    %838 = vmatprep.subr.mxu0 0.0
    %839 = vmatpush1.msra.mxu0 0.0
    %840 = vmatprep.subr.mxu0 0.0
    %841 = vmatpush1.msra.mxu0 0.0
    %842 = vmatprep.subr.mxu0 0.0
    %843 = vmatpush1.msra.mxu0 0.0
    %844 = vmatprep.subr.mxu0 0.0
    %845 = vmatpush1.msra.mxu0 0.0
    %846 = vmatprep.subr.mxu0 0.0
    %847 = vmatpush1.msra.mxu0 0.0
    %848 = vmatprep.subr.mxu0 0.0
    %849 = vmatpush1.msra.mxu0 0.0
    %850 = vmatprep.subr.mxu0 0.0
    %851 = vmatpush1.msra.mxu0 0.0
    %852 = vmatprep.subr.mxu0 0.0
    %853 = vmatpush1.msra.mxu0 0.0
    %854 = vmatprep.subr.mxu0 0.0
    %855 = vmatpush1.msra.mxu0 %v36
    %856 = vmatprep.subr.mxu0 0.0
    %857 = vmatpush1.msra.mxu0 %v35
    %858 = vmatprep.subr.mxu0 0.0
    %859 = vmatpush1.msra.mxu0 %v34
    %860 = vmatprep.subr.mxu0 0.0
    %861 = vmatpush1.msra.mxu0 %v33
    %862 = vmatprep.subr.mxu0 0.0
    %863 = vmatpush2.msra.mxu0 0.0
    %864 = vmatprep.subr.mxu0 0.0
    %865 = vmatpush2.msra.mxu0 0.0
    %866 = vmatprep.subr.mxu0 0.0
    %867 = vmatpush2.msra.mxu0 0.0
    %868 = vmatprep.subr.mxu0 0.0
    %869 = vmatpush2.msra.mxu0 0.0
    %870 = vmatprep.subr.mxu0 0.0
    %871 = vmatpush2.msra.mxu0 0.0
    %872 = vmatprep.subr.mxu0 0.0
    %873 = vmatpush2.msra.mxu0 0.0
    %874 = vmatprep.subr.mxu0 0.0
    %875 = vmatpush2.msra.mxu0 0.0
    %876 = vmatprep.subr.mxu0 0.0
    %877 = vmatpush2.msra.mxu0 0.0
    %878 = vmatprep.subr.mxu0 0.0
    %879 = vmatpush2.msra.mxu0 0.0
    %880 = vmatprep.subr.mxu0 0.0
    %881 = vmatpush2.msra.mxu0 0.0
    %882 = vmatprep.subr.mxu0 0.0
    %883 = vmatpush2.msra.mxu0 0.0
    %884 = vmatprep.subr.mxu0 0.0
    %885 = vmatpush2.msra.mxu0 0.0
    %886 = vmatprep.subr.mxu0 0.0
    %887 = vmatpush2.msra.mxu0 0.0
    %888 = vmatprep.subr.mxu0 0.0
    %889 = vmatpush2.msra.mxu0 0.0
    %890 = vmatprep.subr.mxu0 0.0
    %891 = vmatpush2.msra.mxu0 0.0
    %892 = vmatprep.subr.mxu0 0.0
    %893 = vmatpush2.msra.mxu0 0.0
    %894 = vmatprep.mubr.f32.mxu0 0.0
    %895 = vmatmul.mubr.f32.gmra.mxu0 %v828
    %v896 = vpop.f32.mrf.mxu0
    %v897 = vadd.f32 %v235, %v896
    %v898 = vpop.f32.mrf.mxu0
    %899 = vdwg.mxu0
    %v900 = vld [vmem:[%s1 + $0x10] sm:$0xff]
    %v901 = vmul.f32 %v897, 0.5
    %v902 = vmul.f32 %v901, 1.442695
    %v903 = vpow.pop %v902
    %905 = vrot.lane.b32.xlu0 %v903, 112
    %v906 = vpop.permute.xlu0 %905
    %v908 = vmul.f32 %v900, %v906
    %v909 = vadd.f32 %v897, %v908
    %v910 = vadd.f32 %v897, 1.0
    %v911 = vmul.f32 %v897, %v897
    %913 = vrot.lane.b32.xlu0 %v911, 16
    %v914 = vpop.permute.xlu0 %913
    %v916 = vsub.f32 %v910, %v914
    %v917 = vmul.f32 %v897, 1.442695
    %v918 = vpow.pop %v917
    %v919 = vsub.f32 %v916, %v918
    %921 = vrot.lane.b32.xlu0 %v919, 112
    %v922 = vpop.permute.xlu0 %921
    %v924 = vsel %vm333, %v922, 0.0
    %925 = vadd.xlane.f32.xlu0 %v924
    %v926 = vpop.xlane.xlu0 %925
    %v927 = vmul.f32 %v926, -0.5
    %v928 = vlaneseq
    %v929 = vshrl.u32 %v928, 7
    %v930 = vsub.s32 0, %v929
    %v931 = vrot.slane %v820, %v930
    %v933 = vsel %vm333, %v909, 0
    %935 = vmatprep.subr.mxu0 0.0
    %936 = vmatpush1.msra.mxu0 0.0
    %937 = vmatprep.subr.mxu0 0.0
    %938 = vmatpush1.msra.mxu0 0.0
    %939 = vmatprep.subr.mxu0 0.0
    %940 = vmatpush1.msra.mxu0 0.0
    %941 = vmatprep.subr.mxu0 0.0
    %942 = vmatpush1.msra.mxu0 0.0
    %943 = vmatprep.subr.mxu0 0.0
    %944 = vmatpush1.msra.mxu0 0.0
    %945 = vmatprep.subr.mxu0 0.0
    %946 = vmatpush1.msra.mxu0 0.0
    %947 = vmatprep.subr.mxu0 0.0
    %948 = vmatpush1.msra.mxu0 0.0
    %949 = vmatprep.subr.mxu0 0.0
    %950 = vmatpush1.msra.mxu0 0.0
    %951 = vmatprep.subr.mxu0 0.0
    %952 = vmatpush1.msra.mxu0 0.0
    %953 = vmatprep.subr.mxu0 0.0
    %954 = vmatpush1.msra.mxu0 0.0
    %955 = vmatprep.subr.mxu0 0.0
    %956 = vmatpush1.msra.mxu0 0.0
    %957 = vmatprep.subr.mxu0 0.0
    %958 = vmatpush1.msra.mxu0 0.0
    %959 = vmatprep.subr.mxu0 0.0
    %960 = vmatpush1.msra.mxu0 0.0
    %961 = vmatprep.subr.mxu0 0.0
    %962 = vmatpush1.msra.mxu0 0.0
    %963 = vmatprep.subr.mxu0 0.0
    %964 = vmatpush1.msra.mxu0 %v42
    %965 = vmatprep.subr.mxu0 0.0
    %966 = vmatpush1.msra.mxu0 %v41
    %967 = vmatprep.subr.mxu0 0.0
    %968 = vmatpush2.msra.mxu0 0.0
    %969 = vmatprep.subr.mxu0 0.0
    %970 = vmatpush2.msra.mxu0 0.0
    %971 = vmatprep.subr.mxu0 0.0
    %972 = vmatpush2.msra.mxu0 0.0
    %973 = vmatprep.subr.mxu0 0.0
    %974 = vmatpush2.msra.mxu0 0.0
    %975 = vmatprep.subr.mxu0 0.0
    %976 = vmatpush2.msra.mxu0 0.0
    %977 = vmatprep.subr.mxu0 0.0
    %978 = vmatpush2.msra.mxu0 0.0
    %979 = vmatprep.subr.mxu0 0.0
    %980 = vmatpush2.msra.mxu0 0.0
    %981 = vmatprep.subr.mxu0 0.0
    %982 = vmatpush2.msra.mxu0 0.0
    %983 = vmatprep.subr.mxu0 0.0
    %984 = vmatpush2.msra.mxu0 0.0
    %985 = vmatprep.subr.mxu0 0.0
    %986 = vmatpush2.msra.mxu0 0.0
    %987 = vmatprep.subr.mxu0 0.0
    %988 = vmatpush2.msra.mxu0 0.0
    %989 = vmatprep.subr.mxu0 0.0
    %990 = vmatpush2.msra.mxu0 0.0
    %991 = vmatprep.subr.mxu0 0.0
    %992 = vmatpush2.msra.mxu0 0.0
    %993 = vmatprep.subr.mxu0 0.0
    %994 = vmatpush2.msra.mxu0 0.0
    %995 = vmatprep.subr.mxu0 0.0
    %996 = vmatpush2.msra.mxu0 0.0
    %997 = vmatprep.subr.mxu0 0.0
    %998 = vmatpush2.msra.mxu0 0.0
    %999 = vmatprep.mubr.f32.mxu0 0.0
    %1000 = vmatmul.mubr.f32.gmra.mxu0 %v933
    %v1001 = vpop.f32.mrf.mxu0
    %v1002 = vadd.f32 %v931, %v1001
    %v1003 = vpop.f32.mrf.mxu0
    %1004 = vdwg.mxu0
    %v1005 = vadd.f32 %v1002, %v418
    %v1006 = vmax.f32 %v1005, 0.0
    %v1008 = vsel %vm56, %v1006, 0
    %1010 = vmatprep.subr.mxu0 0.0
    %1011 = vmatpush1.msra.mxu0 0.0
    %1012 = vmatprep.subr.mxu0 0.0
    %1013 = vmatpush1.msra.mxu0 0.0
    %1014 = vmatprep.subr.mxu0 0.0
    %1015 = vmatpush1.msra.mxu0 0.0
    %1016 = vmatprep.subr.mxu0 0.0
    %1017 = vmatpush1.msra.mxu0 0.0
    %1018 = vmatprep.subr.mxu0 0.0
    %1019 = vmatpush1.msra.mxu0 0.0
    %1020 = vmatprep.subr.mxu0 0.0
    %1021 = vmatpush1.msra.mxu0 0.0
    %1022 = vmatprep.subr.mxu0 0.0
    %1023 = vmatpush1.msra.mxu0 0.0
    %1024 = vmatprep.subr.mxu0 0.0
    %1025 = vmatpush1.msra.mxu0 0.0
    %1026 = vmatprep.subr.mxu0 0.0
    %1027 = vmatpush1.msra.mxu0 0.0
    %1028 = vmatprep.subr.mxu0 0.0
    %1029 = vmatpush1.msra.mxu0 0.0
    %1030 = vmatprep.subr.mxu0 0.0
    %1031 = vmatpush1.msra.mxu0 0.0
    %1032 = vmatprep.subr.mxu0 0.0
    %1033 = vmatpush1.msra.mxu0 0.0
    %1034 = vmatprep.subr.mxu0 0.0
    %1035 = vmatpush1.msra.mxu0 %v40
    %1036 = vmatprep.subr.mxu0 0.0
    %1037 = vmatpush1.msra.mxu0 %v39
    %1038 = vmatprep.subr.mxu0 0.0
    %1039 = vmatpush1.msra.mxu0 %v38
    %1040 = vmatprep.subr.mxu0 0.0
    %1041 = vmatpush1.msra.mxu0 %v37
    %1042 = vmatprep.subr.mxu0 0.0
    %1043 = vmatpush2.msra.mxu0 0.0
    %1044 = vmatprep.subr.mxu0 0.0
    %1045 = vmatpush2.msra.mxu0 0.0
    %1046 = vmatprep.subr.mxu0 0.0
    %1047 = vmatpush2.msra.mxu0 0.0
    %1048 = vmatprep.subr.mxu0 0.0
    %1049 = vmatpush2.msra.mxu0 0.0
    %1050 = vmatprep.subr.mxu0 0.0
    %1051 = vmatpush2.msra.mxu0 0.0
    %1052 = vmatprep.subr.mxu0 0.0
    %1053 = vmatpush2.msra.mxu0 0.0
    %1054 = vmatprep.subr.mxu0 0.0
    %1055 = vmatpush2.msra.mxu0 0.0
    %1056 = vmatprep.subr.mxu0 0.0
    %1057 = vmatpush2.msra.mxu0 0.0
    %1058 = vmatprep.subr.mxu0 0.0
    %1059 = vmatpush2.msra.mxu0 0.0
    %1060 = vmatprep.subr.mxu0 0.0
    %1061 = vmatpush2.msra.mxu0 0.0
    %1062 = vmatprep.subr.mxu0 0.0
    %1063 = vmatpush2.msra.mxu0 0.0
    %1064 = vmatprep.subr.mxu0 0.0
    %1065 = vmatpush2.msra.mxu0 0.0
    %1066 = vmatprep.subr.mxu0 0.0
    %1067 = vmatpush2.msra.mxu0 0.0
    %1068 = vmatprep.subr.mxu0 0.0
    %1069 = vmatpush2.msra.mxu0 0.0
    %1070 = vmatprep.subr.mxu0 0.0
    %1071 = vmatpush2.msra.mxu0 0.0
    %1072 = vmatprep.subr.mxu0 0.0
    %1073 = vmatpush2.msra.mxu0 0.0
    %1074 = vmatprep.mubr.f32.mxu0 0.0
    %1075 = vmatmul.mubr.f32.gmra.mxu0 %v1008
    %v1076 = vpop.f32.mrf.mxu0
    %v1077 = vadd.f32 %v424, %v1076
    %v1078 = vpop.f32.mrf.mxu0
    %1079 = vdwg.mxu0
    %v1080 = vsub.f32 0.0, %v1077
    %v1081 = vmax.f32 %v1080, 0.0
    %v1082 = vand.u32 2147483647, %v1077
    %v1083 = vsub.f32 0.0, %v1082
    %v1084 = vmul.f32 %v1083, 1.442695
    %v1085 = vpow.pop %v1084
    %v1086 = vadd.f32 %v1085, 1.0
    %v1087 = vlog2.pop %v1086
    %v1088 = vmul.f32 %v1087, 0.6931472
    %v1089 = vadd.f32 %v1081, %v1088
    %v1090 = vsub.f32 0.0, %v1089
    %v1091 = vmul.f32 %v1090, 1.442695
    %v1092 = vpow.pop %v1091
    %1093 = vst.msk [vmem:[#allocation2 + $0x10] sm:$0xff] %vm56, %v1092
    %v1094 = vmax.f32 %v1090, -100.0
    %v1095 = vadd.f32 %v1077, %v1089
    %v1096 = vsub.f32 0.0, %v1095
    %v1097 = vmax.f32 %v1096, -100.0
    %v1098 = vmul.f32 %v27, %v1094
    %v1099 = vmul.f32 %v28, %v1097
    %v1100 = vadd.f32 %v1098, %v1099
    %v1101 = vsub.f32 0.0, %v1100
    %v1102 = vsel %vm56, %v1101, 0.0
    %1103 = vadd.xlane.f32.xlu0 %v1102
    %v1104 = vpop.xlane.xlu0 %1103
    %v1105 = vadd.f32 %v812, %v1104
    %v1106 = vmul.f32 %v144, %v927
    %1108 = vrot.lane.b32.xlu0 %v1106, 126
    %v1109 = vpop.permute.xlu0 %1108
    %v1111 = vadd.f32 %v818, %v1109
    %v1112 = vld [vmem:[%s3 + $0x3] sm:$0x1]
    %v1113 = vld [vmem:[%s3 + $0x7] sm:$0x1]
    %v1114 = vlaneseq
    %v1115 = vshrl.u32 %v1114, 7
    %v1116 = vsub.s32 0, %v1115
    %v1117 = vrot.slane %v1112, %v1116
    %v1118 = vadd.f32 %v221, %v1117
    %v1119 = vmax.f32 %v1118, 0.0
    %v1121 = vsel %vm56, %v1119, 0
    %1123 = vmatprep.subr.mxu0 0.0
    %1124 = vmatpush1.msra.mxu0 0.0
    %1125 = vmatprep.subr.mxu0 0.0
    %1126 = vmatpush1.msra.mxu0 0.0
    %1127 = vmatprep.subr.mxu0 0.0
    %1128 = vmatpush1.msra.mxu0 0.0
    %1129 = vmatprep.subr.mxu0 0.0
    %1130 = vmatpush1.msra.mxu0 0.0
    %1131 = vmatprep.subr.mxu0 0.0
    %1132 = vmatpush1.msra.mxu0 0.0
    %1133 = vmatprep.subr.mxu0 0.0
    %1134 = vmatpush1.msra.mxu0 0.0
    %1135 = vmatprep.subr.mxu0 0.0
    %1136 = vmatpush1.msra.mxu0 0.0
    %1137 = vmatprep.subr.mxu0 0.0
    %1138 = vmatpush1.msra.mxu0 0.0
    %1139 = vmatprep.subr.mxu0 0.0
    %1140 = vmatpush1.msra.mxu0 0.0
    %1141 = vmatprep.subr.mxu0 0.0
    %1142 = vmatpush1.msra.mxu0 0.0
    %1143 = vmatprep.subr.mxu0 0.0
    %1144 = vmatpush1.msra.mxu0 0.0
    %1145 = vmatprep.subr.mxu0 0.0
    %1146 = vmatpush1.msra.mxu0 0.0
    %1147 = vmatprep.subr.mxu0 0.0
    %1148 = vmatpush1.msra.mxu0 %v36
    %1149 = vmatprep.subr.mxu0 0.0
    %1150 = vmatpush1.msra.mxu0 %v35
    %1151 = vmatprep.subr.mxu0 0.0
    %1152 = vmatpush1.msra.mxu0 %v34
    %1153 = vmatprep.subr.mxu0 0.0
    %1154 = vmatpush1.msra.mxu0 %v33
    %1155 = vmatprep.subr.mxu0 0.0
    %1156 = vmatpush2.msra.mxu0 0.0
    %1157 = vmatprep.subr.mxu0 0.0
    %1158 = vmatpush2.msra.mxu0 0.0
    %1159 = vmatprep.subr.mxu0 0.0
    %1160 = vmatpush2.msra.mxu0 0.0
    %1161 = vmatprep.subr.mxu0 0.0
    %1162 = vmatpush2.msra.mxu0 0.0
    %1163 = vmatprep.subr.mxu0 0.0
    %1164 = vmatpush2.msra.mxu0 0.0
    %1165 = vmatprep.subr.mxu0 0.0
    %1166 = vmatpush2.msra.mxu0 0.0
    %1167 = vmatprep.subr.mxu0 0.0
    %1168 = vmatpush2.msra.mxu0 0.0
    %1169 = vmatprep.subr.mxu0 0.0
    %1170 = vmatpush2.msra.mxu0 0.0
    %1171 = vmatprep.subr.mxu0 0.0
    %1172 = vmatpush2.msra.mxu0 0.0
    %1173 = vmatprep.subr.mxu0 0.0
    %1174 = vmatpush2.msra.mxu0 0.0
    %1175 = vmatprep.subr.mxu0 0.0
    %1176 = vmatpush2.msra.mxu0 0.0
    %1177 = vmatprep.subr.mxu0 0.0
    %1178 = vmatpush2.msra.mxu0 0.0
    %1179 = vmatprep.subr.mxu0 0.0
    %1180 = vmatpush2.msra.mxu0 0.0
    %1181 = vmatprep.subr.mxu0 0.0
    %1182 = vmatpush2.msra.mxu0 0.0
    %1183 = vmatprep.subr.mxu0 0.0
    %1184 = vmatpush2.msra.mxu0 0.0
    %1185 = vmatprep.subr.mxu0 0.0
    %1186 = vmatpush2.msra.mxu0 0.0
    %1187 = vmatprep.mubr.f32.mxu0 0.0
    %1188 = vmatmul.mubr.f32.gmra.mxu0 %v1121
    %v1189 = vpop.f32.mrf.mxu0
    %v1190 = vadd.f32 %v235, %v1189
    %v1191 = vpop.f32.mrf.mxu0
    %1192 = vdwg.mxu0
    %v1193 = vld [vmem:[%s1 + $0x18] sm:$0xff]
    %v1194 = vmul.f32 %v1190, 0.5
    %v1195 = vmul.f32 %v1194, 1.442695
    %v1196 = vpow.pop %v1195
    %1198 = vrot.lane.b32.xlu0 %v1196, 112
    %v1199 = vpop.permute.xlu0 %1198
    %v1201 = vmul.f32 %v1193, %v1199
    %v1202 = vadd.f32 %v1190, %v1201
    %v1203 = vadd.f32 %v1190, 1.0
    %v1204 = vmul.f32 %v1190, %v1190
    %1206 = vrot.lane.b32.xlu0 %v1204, 16
    %v1207 = vpop.permute.xlu0 %1206
    %v1209 = vsub.f32 %v1203, %v1207
    %v1210 = vmul.f32 %v1190, 1.442695
    %v1211 = vpow.pop %v1210
    %v1212 = vsub.f32 %v1209, %v1211
    %1214 = vrot.lane.b32.xlu0 %v1212, 112
    %v1215 = vpop.permute.xlu0 %1214
    %v1217 = vsel %vm333, %v1215, 0.0
    %1218 = vadd.xlane.f32.xlu0 %v1217
    %v1219 = vpop.xlane.xlu0 %1218
    %v1220 = vmul.f32 %v1219, -0.5
    %v1221 = vlaneseq
    %v1222 = vshrl.u32 %v1221, 7
    %v1223 = vsub.s32 0, %v1222
    %v1224 = vrot.slane %v1113, %v1223
    %v1226 = vsel %vm333, %v1202, 0
    %1228 = vmatprep.subr.mxu0 0.0
    %1229 = vmatpush1.msra.mxu0 0.0
    %1230 = vmatprep.subr.mxu0 0.0
    %1231 = vmatpush1.msra.mxu0 0.0
    %1232 = vmatprep.subr.mxu0 0.0
    %1233 = vmatpush1.msra.mxu0 0.0
    %1234 = vmatprep.subr.mxu0 0.0
    %1235 = vmatpush1.msra.mxu0 0.0
    %1236 = vmatprep.subr.mxu0 0.0
    %1237 = vmatpush1.msra.mxu0 0.0
    %1238 = vmatprep.subr.mxu0 0.0
    %1239 = vmatpush1.msra.mxu0 0.0
    %1240 = vmatprep.subr.mxu0 0.0
    %1241 = vmatpush1.msra.mxu0 0.0
    %1242 = vmatprep.subr.mxu0 0.0
    %1243 = vmatpush1.msra.mxu0 0.0
    %1244 = vmatprep.subr.mxu0 0.0
    %1245 = vmatpush1.msra.mxu0 0.0
    %1246 = vmatprep.subr.mxu0 0.0
    %1247 = vmatpush1.msra.mxu0 0.0
    %1248 = vmatprep.subr.mxu0 0.0
    %1249 = vmatpush1.msra.mxu0 0.0
    %1250 = vmatprep.subr.mxu0 0.0
    %1251 = vmatpush1.msra.mxu0 0.0
    %1252 = vmatprep.subr.mxu0 0.0
    %1253 = vmatpush1.msra.mxu0 0.0
    %1254 = vmatprep.subr.mxu0 0.0
    %1255 = vmatpush1.msra.mxu0 0.0
    %1256 = vmatprep.subr.mxu0 0.0
    %1257 = vmatpush1.msra.mxu0 %v42
    %1258 = vmatprep.subr.mxu0 0.0
    %1259 = vmatpush1.msra.mxu0 %v41
    %1260 = vmatprep.subr.mxu0 0.0
    %1261 = vmatpush2.msra.mxu0 0.0
    %1262 = vmatprep.subr.mxu0 0.0
    %1263 = vmatpush2.msra.mxu0 0.0
    %1264 = vmatprep.subr.mxu0 0.0
    %1265 = vmatpush2.msra.mxu0 0.0
    %1266 = vmatprep.subr.mxu0 0.0
    %1267 = vmatpush2.msra.mxu0 0.0
    %1268 = vmatprep.subr.mxu0 0.0
    %1269 = vmatpush2.msra.mxu0 0.0
    %1270 = vmatprep.subr.mxu0 0.0
    %1271 = vmatpush2.msra.mxu0 0.0
    %1272 = vmatprep.subr.mxu0 0.0
    %1273 = vmatpush2.msra.mxu0 0.0
    %1274 = vmatprep.subr.mxu0 0.0
    %1275 = vmatpush2.msra.mxu0 0.0
    %1276 = vmatprep.subr.mxu0 0.0
    %1277 = vmatpush2.msra.mxu0 0.0
    %1278 = vmatprep.subr.mxu0 0.0
    %1279 = vmatpush2.msra.mxu0 0.0
    %1280 = vmatprep.subr.mxu0 0.0
    %1281 = vmatpush2.msra.mxu0 0.0
    %1282 = vmatprep.subr.mxu0 0.0
    %1283 = vmatpush2.msra.mxu0 0.0
    %1284 = vmatprep.subr.mxu0 0.0
    %1285 = vmatpush2.msra.mxu0 0.0
    %1286 = vmatprep.subr.mxu0 0.0
    %1287 = vmatpush2.msra.mxu0 0.0
    %1288 = vmatprep.subr.mxu0 0.0
    %1289 = vmatpush2.msra.mxu0 0.0
    %1290 = vmatprep.subr.mxu0 0.0
    %1291 = vmatpush2.msra.mxu0 0.0
    %1292 = vmatprep.mubr.f32.mxu0 0.0
    %1293 = vmatmul.mubr.f32.gmra.mxu0 %v1226
    %v1294 = vpop.f32.mrf.mxu0
    %v1295 = vadd.f32 %v1224, %v1294
    %v1296 = vpop.f32.mrf.mxu0
    %1297 = vdwg.mxu0
    %v1298 = vadd.f32 %v1295, %v418
    %v1299 = vmax.f32 %v1298, 0.0
    %v1301 = vsel %vm56, %v1299, 0
    %1303 = vmatprep.subr.mxu0 0.0
    %1304 = vmatpush1.msra.mxu0 0.0
    %1305 = vmatprep.subr.mxu0 0.0
    %1306 = vmatpush1.msra.mxu0 0.0
    %1307 = vmatprep.subr.mxu0 0.0
    %1308 = vmatpush1.msra.mxu0 0.0
    %1309 = vmatprep.subr.mxu0 0.0
    %1310 = vmatpush1.msra.mxu0 0.0
    %1311 = vmatprep.subr.mxu0 0.0
    %1312 = vmatpush1.msra.mxu0 0.0
    %1313 = vmatprep.subr.mxu0 0.0
    %1314 = vmatpush1.msra.mxu0 0.0
    %1315 = vmatprep.subr.mxu0 0.0
    %1316 = vmatpush1.msra.mxu0 0.0
    %1317 = vmatprep.subr.mxu0 0.0
    %1318 = vmatpush1.msra.mxu0 0.0
    %1319 = vmatprep.subr.mxu0 0.0
    %1320 = vmatpush1.msra.mxu0 0.0
    %1321 = vmatprep.subr.mxu0 0.0
    %1322 = vmatpush1.msra.mxu0 0.0
    %1323 = vmatprep.subr.mxu0 0.0
    %1324 = vmatpush1.msra.mxu0 0.0
    %1325 = vmatprep.subr.mxu0 0.0
    %1326 = vmatpush1.msra.mxu0 0.0
    %1327 = vmatprep.subr.mxu0 0.0
    %1328 = vmatpush1.msra.mxu0 %v40
    %1329 = vmatprep.subr.mxu0 0.0
    %1330 = vmatpush1.msra.mxu0 %v39
    %1331 = vmatprep.subr.mxu0 0.0
    %1332 = vmatpush1.msra.mxu0 %v38
    %1333 = vmatprep.subr.mxu0 0.0
    %1334 = vmatpush1.msra.mxu0 %v37
    %1335 = vmatprep.subr.mxu0 0.0
    %1336 = vmatpush2.msra.mxu0 0.0
    %1337 = vmatprep.subr.mxu0 0.0
    %1338 = vmatpush2.msra.mxu0 0.0
    %1339 = vmatprep.subr.mxu0 0.0
    %1340 = vmatpush2.msra.mxu0 0.0
    %1341 = vmatprep.subr.mxu0 0.0
    %1342 = vmatpush2.msra.mxu0 0.0
    %1343 = vmatprep.subr.mxu0 0.0
    %1344 = vmatpush2.msra.mxu0 0.0
    %1345 = vmatprep.subr.mxu0 0.0
    %1346 = vmatpush2.msra.mxu0 0.0
    %1347 = vmatprep.subr.mxu0 0.0
    %1348 = vmatpush2.msra.mxu0 0.0
    %1349 = vmatprep.subr.mxu0 0.0
    %1350 = vmatpush2.msra.mxu0 0.0
    %1351 = vmatprep.subr.mxu0 0.0
    %1352 = vmatpush2.msra.mxu0 0.0
    %1353 = vmatprep.subr.mxu0 0.0
    %1354 = vmatpush2.msra.mxu0 0.0
    %1355 = vmatprep.subr.mxu0 0.0
    %1356 = vmatpush2.msra.mxu0 0.0
    %1357 = vmatprep.subr.mxu0 0.0
    %1358 = vmatpush2.msra.mxu0 0.0
    %1359 = vmatprep.subr.mxu0 0.0
    %1360 = vmatpush2.msra.mxu0 0.0
    %1361 = vmatprep.subr.mxu0 0.0
    %1362 = vmatpush2.msra.mxu0 0.0
    %1363 = vmatprep.subr.mxu0 0.0
    %1364 = vmatpush2.msra.mxu0 0.0
    %1365 = vmatprep.subr.mxu0 0.0
    %1366 = vmatpush2.msra.mxu0 0.0
    %1367 = vmatprep.mubr.f32.mxu0 0.0
    %1368 = vmatmul.mubr.f32.gmra.mxu0 %v1301
    %v1369 = vpop.f32.mrf.mxu0
    %v1370 = vadd.f32 %v424, %v1369
    %v1371 = vpop.f32.mrf.mxu0
    %1372 = vdwg.mxu0
    %v1373 = vsub.f32 0.0, %v1370
    %v1374 = vmax.f32 %v1373, 0.0
    %v1375 = vand.u32 2147483647, %v1370
    %v1376 = vsub.f32 0.0, %v1375
    %v1377 = vmul.f32 %v1376, 1.442695
    %v1378 = vpow.pop %v1377
    %v1379 = vadd.f32 %v1378, 1.0
    %v1380 = vlog2.pop %v1379
    %v1381 = vmul.f32 %v1380, 0.6931472
    %v1382 = vadd.f32 %v1374, %v1381
    %v1383 = vsub.f32 0.0, %v1382
    %v1384 = vmul.f32 %v1383, 1.442695
    %v1385 = vpow.pop %v1384
    %1386 = vst.msk [vmem:[#allocation2 + $0x18] sm:$0xff] %vm56, %v1385
    %v1387 = vmax.f32 %v1383, -100.0
    %v1388 = vadd.f32 %v1370, %v1382
    %v1389 = vsub.f32 0.0, %v1388
    %v1390 = vmax.f32 %v1389, -100.0
    %v1391 = vmul.f32 %v27, %v1387
    %v1392 = vmul.f32 %v28, %v1390
    %v1393 = vadd.f32 %v1391, %v1392
    %v1394 = vsub.f32 0.0, %v1393
    %v1395 = vsel %vm56, %v1394, 0.0
    %1396 = vadd.xlane.f32.xlu0 %v1395
    %v1397 = vpop.xlane.xlu0 %1396
    %v1398 = vadd.f32 %v1105, %v1397
    %v1399 = vmul.f32 %v144, %v1220
    %1401 = vrot.lane.b32.xlu0 %v1399, 125
    %v1402 = vpop.permute.xlu0 %1401
    %v1404 = vadd.f32 %v1111, %v1402
    %v1405 = vsub.f32 %v149, %v1404
    %v1406 = vmul.f32 %v1398, 0.0078125
    %v1407 = vsub.f32 %v1406, %v1405
    %vm1408 = vcmask 7168
    %v1409 = vsel %vm1408, %v1407, 0.0
    %1410 = vadd.xlane.f32.xlu0 %v1409
    %v1411 = vpop.xlane.xlu0 %1410
    %v1412 = vrot.slane %v1411, 4
    %v1413 = vadd.f32 %v1411, %v1412
    %v1414 = vrot.slane %v1413, 2
    %v1415 = vadd.f32 %v1413, %v1414
    %v1416 = vrot.slane %v1415, 1
    %v1417 = vadd.f32 %v1415, %v1416
    %s1418 = vtos %v1417
    %v1419 = vrcp.pop 8.0
    %s1420 = vtos %v1419
    %s1421 = smul.f32 %s1418, %s1420
    %s1422 = ssub.f32 %s1421, -1.3862944
    %s1423 = scalar_lea.smem [#allocation5], 0
    %1424 = sst [smem:[%s1423]] %s1422
    // Predicated region
    $region26: #{svi_forward.1} parent=1 // pred_check
      _
    $region27: #{svi_forward.1} parent=1 // pred_check_branch
      %1426 = sbr.rel (0) target = $region29
    $region28: #{svi_forward.1} parent=1 // pred_region
      %s1428 = ssub.s32 512, 512
      %1429 = vsyncadd [#allocation3], %s1428
      %s1430 = sshll.u32 [#allocation2], 4
      %s1431 = int_to_ptr.vmem [resolvable:$true] %s1430
      %1436 = dma.vmem_to_hbm [thread:$0]  %s1431, 512, %s6, [#allocation3], 128, 128, 8
    $region29: #{svi_forward.1} parent=1 // pred_fallthru
      _
    // Predicated region
    $region30: #{svi_forward.1} parent=1 // pred_check
      _
    $region31: #{svi_forward.1} parent=1 // pred_check_branch
      %1438 = sbr.rel (0) target = $region33
    $region32: #{svi_forward.1} parent=1 // pred_region
      %s1440 = ssub.s32 16, 16
      %1441 = vsyncadd [#allocation4], %s1440
      %1444 = dma.smem_to_hbm [#allocation5], 16, %s7, [#allocation4]
    $region33: #{svi_forward.1} parent=1 // pred_fallthru
      _
    // Predicated region
    $region34: #{svi_forward.1} parent=1 // pred_check
      _
    $region35: #{svi_forward.1} parent=1 // pred_check_branch
      %1446 = sbr.rel (0) target = $region37
    $region36: #{svi_forward.1} parent=1 // pred_region
      %1447 = dma.done [#allocation3], 512
    $region37: #{svi_forward.1} parent=1 // pred_fallthru
      _
    // Predicated region
    $region38: #{svi_forward.1} parent=1 // pred_check
      _
    $region39: #{svi_forward.1} parent=1 // pred_check_branch
      %1449 = sbr.rel (0) target = $region41
    $region40: #{svi_forward.1} parent=1 // pred_region
      %1450 = dma.done [#allocation4], 16
    $region41: #{svi_forward.1} parent=1 // pred_fallthru
      _
    %1451 = sfence
    %1452 = vsyncpa [#allocation3], 1
    %1453 = vsyncpa [#allocation4], 1

</llo_original>
